<compile_context>
chip_gen: v5e
topology: v5e:2x2
jax: 0.10.0
libtpu: 0.0.40
codegen_flags: <defaults>
</compile_context>

<pallas_src>
import functools

import jax
import jax.numpy as jnp
from jax import lax
from jax.experimental import pallas as pl
from jax.experimental.pallas import tpu as pltpu


# ---------------------------------------------------------------------------
# Fused kernel body: norm1 -> attention -> proj/motion_proj -> residual ->
#                    norm2 -> fc1 -> DWConv -> PReLU -> fc2 -> final residual
# ---------------------------------------------------------------------------
def _fused_body(x1_ref, x2_ref, cor_ref,
                n1s_ref, n1b_ref, qw_ref, kw_ref, kb_ref, vw_ref, vb_ref,
                corw_ref, projw_ref, projb_ref, mprojw_ref, mprojb_ref,
                fc1w_ref, fc1b_ref, prelu_ref, fc2w_ref, fc2b_ref,
                xout_ref, motion_ref, xattn_scr, crev_scr,
                *, num_heads, bt, rev_local, shared):
    f32 = jnp.float32
    bf16 = jnp.bfloat16
    C = qw_ref.shape[0]
    M = corw_ref.shape[1]
    N = x1_ref.shape[2]
    hd = C // num_heads
    md = M // num_heads
    rows = bt * N

    # ---- layout flip (C, N) -> (N, C) done in-kernel (XLU; overlaps MXU work);
    #      rows of all bt batches stacked into one token-major slab.
    def to_rows(ref):
        parts = [jnp.transpose(ref[b]) for b in range(bt)]
        return parts[0] if bt == 1 else jnp.concatenate(parts, axis=0)

    xt = to_rows(x1_ref)                      # raw x rows,         (rows, C)
    x2t = xt if shared else to_rows(x2_ref)   # raw x_reverse rows, (rows, C)

    # ---- norm1 (eval-mode BatchNorm1d) as per-channel affine (needed for q + residual).
    xnorm = xt * n1s_ref[...] + n1b_ref[...]

    # ---- dense position-wise projections over all bt*N rows (one MXU pass each).
    #      softmax scale folded into qw; norm1 folded into kw/vw (+bias) -> raw rows in.
    q = jnp.dot(xnorm.astype(bf16), qw_ref[...], preferred_element_type=f32)
    k = jnp.dot(x2t.astype(bf16), kw_ref[...], preferred_element_type=f32) + kb_ref[...]
    v = jnp.dot(x2t.astype(bf16), vw_ref[...], preferred_element_type=f32) + vb_ref[...]

    # ---- cor_embed: contraction length 3 -> three broadcast FMAs on the VPU.
    cor = cor_ref[...].reshape(rows, cor_ref.shape[2])
    cw = corw_ref[...]
    ce = (cor[:, 0:1] * cw[0:1, :] + cor[:, 1:2] * cw[1:2, :]
          + cor[:, 2:3] * cw[2:3, :])                               # (rows, M)

    # ---- per (batch, head) attention.  Head outputs go straight into VMEM scratch
    #      slabs at static column offsets (no lane-axis concats; scores/probs die at
    #      the store).  The batch reversal is a static row-reindex (rev_local).
    # TODO(synk): large-N path: KV grid axis + online softmax (flash-style).
    for b in range(bt):
        b2 = (b + rev_local) % bt
        qr = slice(b * N, (b + 1) * N)
        kr = slice(b2 * N, (b2 + 1) * N)
        for h in range(num_heads):
            cc = slice(h * hd, (h + 1) * hd)
            mc = slice(h * md, (h + 1) * md)
            qh = q[qr, cc].astype(bf16)
            kh = k[kr, cc].astype(bf16)
            s = lax.dot_general(qh, kh, (((1,), (1,)), ((), ())),
                                preferred_element_type=f32)          # (N, N)
            s = s - jnp.max(s, axis=-1, keepdims=True)
            p = jnp.exp(s)
            p = p * pl.reciprocal(jnp.sum(p, axis=-1, keepdims=True), approx=True)
            pb = p.astype(bf16)
            # two narrow dots (widths hd, md) instead of one concat-width dot: same
            # MXU passes at <=128 lanes, no cross-lane relayout for a [v | ce] concat.
            xattn_scr[qr, cc] = jnp.dot(pb, v[kr, cc].astype(bf16),
                                        preferred_element_type=f32)
            crev_scr[qr, mc] = jnp.dot(pb, ce[qr, mc].astype(bf16),
                                       preferred_element_type=f32)

    # ---- output projections + attention residual (dense over all rows).
    x_app = jnp.dot(xattn_scr[...].astype(bf16), projw_ref[...],
                    preferred_element_type=f32) + projb_ref[...]
    motion = jnp.dot((crev_scr[...] - ce).astype(bf16), mprojw_ref[...],
                     preferred_element_type=f32) + mprojb_ref[...]
    x_plus = xnorm + x_app                    # x_norm + x_appearence (stays in VMEM)

    # ---- MLP: fc1 (norm2 + DWConv per-channel affine folded in) -> PReLU -> fc2.
    h1 = jnp.dot(x_plus.astype(bf16), fc1w_ref[...],
                 preferred_element_type=f32) + fc1b_ref[...]
    a = prelu_ref[0]                          # PReLU slope (scalar, SMEM)
    h1 = jnp.where(h1 >= 0.0, h1, a * h1)
    z = jnp.dot(h1.astype(bf16), fc2w_ref[...],
                preferred_element_type=f32) + fc2b_ref[...]          # (rows, C)

    # ---- final residual with the RAW input (matches torch: x = x + mlp_out.permute),
    #      written directly in (C, N) layout -> no post-kernel transpose pass over HBM.
    for b in range(bt):
        zb = jnp.transpose(z[b * N:(b + 1) * N, :])                  # (C, N)
        xout_ref[b] = (x1_ref[b] + zb).astype(xout_ref.dtype)
    motion_ref[...] = motion.reshape(bt, N, M).astype(motion_ref.dtype)


def _make_kernel(num_heads, bt, rev_local, shared):
    body = functools.partial(_fused_body, num_heads=num_heads, bt=bt,
                             rev_local=rev_local, shared=shared)
    if shared:
        # Whole batch in one block: x_reverse is just a static row reindex of the same
        # block (no second DMA of x).
        def kernel(x1_ref, cor_ref, *rest):
            body(x1_ref, x1_ref, cor_ref, *rest)
    else:
        def kernel(x1_ref, x2_ref, cor_ref, *rest):
            body(x1_ref, x2_ref, cor_ref, *rest)
    return kernel


def _choose_batch_tile(B, N):
    """Pick the batch tile bt.  Tiny problems run as a single program (everything stays
    in VMEM, reversal handled in-block); larger ones use bt | (B//2) so the reversed
    block is contiguous (free via index_map) and the grid keeps >=2 steps for
    pipelining / megacore sharding."""
    half = B // 2
    if half == 0 or B * N <= 256:
        return B, True
    bt = 1
    for d in range(1, half + 1):
        if half % d == 0 and B % d == 0 and d * N <= 512:
            bt = d
    return bt, False


# ---------------------------------------------------------------------------
# Parameters + forward
# ---------------------------------------------------------------------------
def init_params(key, dim, motion_dim, mlp_ratio=4.0):
    """Synthetic init matching the module: trunc_normal(0.02)~N(0,0.02), bias 0."""
    hidden = int(dim * mlp_ratio)
    ks = jax.random.split(key, 8)
    std = 0.02
    w = lambda k, shape: std * jax.random.normal(k, shape, dtype=jnp.float32)
    ones = lambda n: jnp.ones((n,), jnp.float32)
    zeros = lambda n: jnp.zeros((n,), jnp.float32)
    return {
        # --- InterFrameAttention (weights stored (in, out) == torch W.T) ---
        "q_w": w(ks[0], (dim, dim)),                     # qkv_bias=False -> no bias
        "kv_w": w(ks[1], (dim, 2 * dim)),
        "cor_w": w(ks[2], (3, motion_dim)),
        "proj_w": w(ks[3], (dim, dim)),
        "proj_b": zeros(dim),
        "mproj_w": w(ks[4], (motion_dim, motion_dim)),
        "mproj_b": zeros(motion_dim),
        # --- norm1 / norm2: BatchNorm1d (eval-mode running stats) ---
        "bn1_gamma": ones(dim), "bn1_beta": zeros(dim),
        "bn1_mean": zeros(dim), "bn1_var": ones(dim),
        "bn2_gamma": ones(dim), "bn2_beta": zeros(dim),
        "bn2_mean": zeros(dim), "bn2_var": ones(dim),
        # --- Mlp ---
        "fc1_w": w(ks[5], (dim, hidden)),
        "fc1_b": zeros(hidden),
        "dw_w": 1.0 + 0.1 * jax.random.normal(ks[6], (hidden,), dtype=jnp.float32),
        "dw_b": zeros(hidden),
        "prelu_a": jnp.full((1,), 0.25, jnp.float32),
        "fc2_w": w(ks[7], (hidden, dim)),
        "fc2_b": zeros(dim),
    }


def motion_former_block(params, x, cor, num_heads, qk_scale=None, eps=1e-5):
    """MotionFormerBlock.forward (inference).  x: (nwB, dim, N), cor: (nwB, N, 3).
    Returns (x_out (nwB, dim, N), x_motion (nwB, N, motion_dim))."""
    f32 = jnp.float32
    bf16 = jnp.bfloat16
    B, C, N = x.shape
    M = params["cor_w"].shape[1]
    hidden = params["fc1_w"].shape[1]
    hd = C // num_heads
    scale = qk_scale if qk_scale is not None else hd ** (-0.5)

    # --- fold eval-mode BatchNorm1d into per-channel affines -------------------
    s1 = params["bn1_gamma"] * lax.rsqrt(params["bn1_var"] + eps)
    t1 = params["bn1_beta"] - params["bn1_mean"] * s1
    s2 = params["bn2_gamma"] * lax.rsqrt(params["bn2_var"] + eps)
    t2 = params["bn2_beta"] - params["bn2_mean"] * s2
    n1s = s1.reshape(1, C)
    n1b = t1.reshape(1, C)

    # --- host-side constant folding (f32 math, then bf16 cast for MXU operands) ---
    qw = (params["q_w"] * scale).astype(bf16)             # softmax scale -> q_w
    k_w = params["kv_w"][:, :C]                           # split kv -> no in-kernel lane slice
    v_w = params["kv_w"][:, C:]
    kw = (s1[:, None] * k_w).astype(bf16)                 # norm1 -> k_w / v_w (+ bias)
    kb = (t1.reshape(1, C) @ k_w).astype(f32)
    vw = (s1[:, None] * v_w).astype(bf16)
    vb = (t1.reshape(1, C) @ v_w).astype(f32)
    corw = params["cor_w"].astype(f32)                    # K=3: used on the VPU, keep f32
    projw = params["proj_w"].astype(bf16)
    projb = params["proj_b"].reshape(1, C).astype(f32)
    mprojw = params["mproj_w"].astype(bf16)
    mprojb = params["mproj_b"].reshape(1, M).astype(f32)
    dw = params["dw_w"].reshape(1, hidden)
    db = params["dw_b"].reshape(1, hidden)
    fc1w = (s2[:, None] * params["fc1_w"] * dw).astype(bf16)        # norm2 + DWConv -> fc1
    fc1b = ((t2.reshape(1, C) @ params["fc1_w"]
             + params["fc1_b"].reshape(1, hidden)) * dw + db).astype(f32)
    fc2w = params["fc2_w"].astype(bf16)
    fc2b = params["fc2_b"].reshape(1, C).astype(f32)
    prelu = params["prelu_a"].reshape(1).astype(f32)

    # --- grid / batch tiling ----------------------------------------------------
    half = B // 2
    bt, shared = _choose_batch_tile(B, N)
    nblocks = B // bt
    rev_local = half % bt if shared else 0
    if not shared:
        assert half % bt == 0 and B % bt == 0

    kern = _make_kernel(num_heads=num_heads, bt=bt, rev_local=rev_local, shared=shared)

    def wfull(a):
        nd = a.ndim
        # TODO(synk): on v7x at production sizes add pipeline_mode=pl.Buffered(1) so
        #             constant weights are not double-buffered in its 64 MiB VMEM.
        return pl.BlockSpec(a.shape, lambda i: (0,) * nd)

    in_specs = [pl.BlockSpec((bt, C, N), lambda i: (i, 0, 0))]              # x  (x1 blocks)
    inputs = [x]
    if not shared:
        off = half // bt
        in_specs.append(pl.BlockSpec((bt, C, N),
                                     lambda i: ((i + off) % nblocks, 0, 0)))  # x_reverse blocks
        inputs.append(x)
    in_specs.append(pl.BlockSpec((bt, N, cor.shape[2]), lambda i: (i, 0, 0)))
    inputs.append(cor)

    weights = [n1s, n1b, qw, kw, kb, vw, vb, corw, projw, projb, mprojw, mprojb,
               fc1w, fc1b]
    in_specs += [wfull(a) for a in weights]
    inputs += weights
    in_specs.append(pl.BlockSpec(memory_space=pltpu.MemorySpace.SMEM))        # PReLU slope
    inputs.append(prelu)
    tail = [fc2w, fc2b]
    in_specs += [wfull(a) for a in tail]
    inputs += tail

    x_out, x_motion = pl.pallas_call(
        kern,
        out_shape=(jax.ShapeDtypeStruct((B, C, N), f32),
                   jax.ShapeDtypeStruct((B, N, M), f32)),
        grid=(nblocks,),
        in_specs=in_specs,
        out_specs=(pl.BlockSpec((bt, C, N), lambda i: (i, 0, 0)),
                   pl.BlockSpec((bt, N, M), lambda i: (i, 0, 0))),
        scratch_shapes=[pltpu.VMEM((bt * N, C), f32),      # per-head x_attn slab
                        pltpu.VMEM((bt * N, M), f32)],     # per-head c_reverse slab
        compiler_params=pltpu.CompilerParams(
            dimension_semantics=("parallel",),
            vmem_limit_bytes=32 * 1024 * 1024),
    )(*inputs)
    return x_out, x_motion


if __name__ == "__main__":
    nwB, N, dim, motion_dim, num_heads = 2, 16, 32, 16, 4

    key = jax.random.PRNGKey(0)
    k_params, k_x, k_cor = jax.random.split(key, 3)

    params = init_params(k_params, dim, motion_dim, mlp_ratio=4.0)
    x = jax.random.normal(k_x, (nwB, dim, N), dtype=jnp.float32)
    cor = jax.random.normal(k_cor, (nwB, N, 3), dtype=jnp.float32)

    x_out, x_motion = motion_former_block(params, x, cor, num_heads)
    jax.block_until_ready((x_out, x_motion))

    assert x_out.shape == (nwB, dim, N)
    assert x_motion.shape == (nwB, N, motion_dim)
    print("KERNEL_OK")
</pallas_src>

<mosaic_0001>
module attributes {stable_mosaic.version = 11 : i64} {
  func.func @kernel(%arg0: i32, %arg1: memref<2x32x16xf32, #tpu.memory_space<vmem>>, %arg2: memref<2x16x3xf32, #tpu.memory_space<vmem>>, %arg3: memref<1x32xf32, #tpu.memory_space<vmem>>, %arg4: memref<1x32xf32, #tpu.memory_space<vmem>>, %arg5: memref<32x32xbf16, #tpu.memory_space<vmem>>, %arg6: memref<32x32xbf16, #tpu.memory_space<vmem>>, %arg7: memref<1x32xf32, #tpu.memory_space<vmem>>, %arg8: memref<32x32xbf16, #tpu.memory_space<vmem>>, %arg9: memref<1x32xf32, #tpu.memory_space<vmem>>, %arg10: memref<3x16xf32, #tpu.memory_space<vmem>>, %arg11: memref<32x32xbf16, #tpu.memory_space<vmem>>, %arg12: memref<1x32xf32, #tpu.memory_space<vmem>>, %arg13: memref<16x16xbf16, #tpu.memory_space<vmem>>, %arg14: memref<1x16xf32, #tpu.memory_space<vmem>>, %arg15: memref<32x128xbf16, #tpu.memory_space<vmem>>, %arg16: memref<1x128xf32, #tpu.memory_space<vmem>>, %arg17: memref<1xf32, #tpu.memory_space<smem>>, %arg18: memref<128x32xbf16, #tpu.memory_space<vmem>>, %arg19: memref<1x32xf32, #tpu.memory_space<vmem>>, %arg20: memref<2x32x16xf32, #tpu.memory_space<vmem>>, %arg21: memref<2x16x16xf32, #tpu.memory_space<vmem>>, %arg22: memref<32x32xf32, #tpu.memory_space<vmem>>, %arg23: memref<32x16xf32, #tpu.memory_space<vmem>>) attributes {dimension_semantics = [#tpu.dimension_semantics<parallel>], iteration_bounds = array<i64: 1>, scalar_prefetch = 0 : i64, scratch_operands = 2 : i64, tpu.core_type = #tpu.core_type<tc>, window_params = [{transform_indices = @transform_0, window_bounds = array<i64: 2, 32, 16>}, {transform_indices = @transform_1, window_bounds = array<i64: 2, 16, 3>}, {pipeline_mode = #tpu.pipeline_mode<synchronous>, transform_indices = @transform_2, window_bounds = array<i64: 1, 32>}, {pipeline_mode = #tpu.pipeline_mode<synchronous>, transform_indices = @transform_3, window_bounds = array<i64: 1, 32>}, {pipeline_mode = #tpu.pipeline_mode<synchronous>, transform_indices = @transform_4, window_bounds = array<i64: 32, 32>}, {pipeline_mode = #tpu.pipeline_mode<synchronous>, transform_indices = @transform_5, window_bounds = array<i64: 32, 32>}, {pipeline_mode = #tpu.pipeline_mode<synchronous>, transform_indices = @transform_6, window_bounds = array<i64: 1, 32>}, {pipeline_mode = #tpu.pipeline_mode<synchronous>, transform_indices = @transform_7, window_bounds = array<i64: 32, 32>}, {pipeline_mode = #tpu.pipeline_mode<synchronous>, transform_indices = @transform_8, window_bounds = array<i64: 1, 32>}, {pipeline_mode = #tpu.pipeline_mode<synchronous>, transform_indices = @transform_9, window_bounds = array<i64: 3, 16>}, {pipeline_mode = #tpu.pipeline_mode<synchronous>, transform_indices = @transform_10, window_bounds = array<i64: 32, 32>}, {pipeline_mode = #tpu.pipeline_mode<synchronous>, transform_indices = @transform_11, window_bounds = array<i64: 1, 32>}, {pipeline_mode = #tpu.pipeline_mode<synchronous>, transform_indices = @transform_12, window_bounds = array<i64: 16, 16>}, {pipeline_mode = #tpu.pipeline_mode<synchronous>, transform_indices = @transform_13, window_bounds = array<i64: 1, 16>}, {pipeline_mode = #tpu.pipeline_mode<synchronous>, transform_indices = @transform_14, window_bounds = array<i64: 32, 128>}, {pipeline_mode = #tpu.pipeline_mode<synchronous>, transform_indices = @transform_15, window_bounds = array<i64: 1, 128>}, {transform_indices = @transform_16, window_bounds = array<i64: 1>}, {pipeline_mode = #tpu.pipeline_mode<synchronous>, transform_indices = @transform_17, window_bounds = array<i64: 128, 32>}, {pipeline_mode = #tpu.pipeline_mode<synchronous>, transform_indices = @transform_18, window_bounds = array<i64: 1, 32>}, {transform_indices = @transform_19, window_bounds = array<i64: 2, 32, 16>}, {transform_indices = @transform_20, window_bounds = array<i64: 2, 16, 16>}]} {
    %c0 = arith.constant 0 : index
    %c0_0 = arith.constant 0 : index
    %c0_1 = arith.constant 0 : index
    %0 = vector.load %arg1[%c0, %c0_0, %c0_1] : memref<2x32x16xf32, #tpu.memory_space<vmem>>, vector<1x32x16xf32>
    %1 = vector.shape_cast %0 : vector<1x32x16xf32> to vector<32x16xf32>
    %2 = tpu.transpose %1, [1, 0] : vector<32x16xf32> -> vector<16x32xf32>
    %c1 = arith.constant 1 : index
    %c0_2 = arith.constant 0 : index
    %c0_3 = arith.constant 0 : index
    %3 = vector.load %arg1[%c1, %c0_2, %c0_3] : memref<2x32x16xf32, #tpu.memory_space<vmem>>, vector<1x32x16xf32>
    %4 = vector.shape_cast %3 : vector<1x32x16xf32> to vector<32x16xf32>
    %5 = tpu.transpose %4, [1, 0] : vector<32x16xf32> -> vector<16x32xf32>
    %6 = tpu.concatenate %2, %5 in 0 : vector<16x32xf32>, vector<16x32xf32> -> vector<32x32xf32>
    %c0_4 = arith.constant 0 : index
    %c0_5 = arith.constant 0 : index
    %7 = vector.load %arg3[%c0_4, %c0_5] : memref<1x32xf32, #tpu.memory_space<vmem>>, vector<1x32xf32>
    %8 = vector.broadcast %7 : vector<1x32xf32> to vector<32x32xf32>
    %9 = arith.mulf %6, %8 : vector<32x32xf32>
    %c0_6 = arith.constant 0 : index
    %c0_7 = arith.constant 0 : index
    %10 = vector.load %arg4[%c0_6, %c0_7] : memref<1x32xf32, #tpu.memory_space<vmem>>, vector<1x32xf32>
    %11 = vector.broadcast %10 : vector<1x32xf32> to vector<32x32xf32>
    %12 = arith.addf %9, %11 : vector<32x32xf32>
    %13 = arith.truncf %12 : vector<32x32xf32> to vector<32x32xbf16>
    %c0_8 = arith.constant 0 : index
    %c0_9 = arith.constant 0 : index
    %14 = vector.load %arg5[%c0_8, %c0_9] : memref<32x32xbf16, #tpu.memory_space<vmem>>, vector<32x32xbf16>
    %cst = arith.constant dense<0.000000e+00> : vector<32x32xf32>
    %15 = tpu.matmul %13, %14, %cst {dimension_numbers = #tpu.dot_dimension_numbers<[1], [0], [0], [1], [0, 0, 1, 1], [], []>} : vector<32x32xbf16>, vector<32x32xbf16>, vector<32x32xf32> -> vector<32x32xf32>
    %16 = arith.truncf %6 : vector<32x32xf32> to vector<32x32xbf16>
    %c0_10 = arith.constant 0 : index
    %c0_11 = arith.constant 0 : index
    %17 = vector.load %arg6[%c0_10, %c0_11] : memref<32x32xbf16, #tpu.memory_space<vmem>>, vector<32x32xbf16>
    %cst_12 = arith.constant dense<0.000000e+00> : vector<32x32xf32>
    %18 = tpu.matmul %16, %17, %cst_12 {dimension_numbers = #tpu.dot_dimension_numbers<[1], [0], [0], [1], [0, 0, 1, 1], [], []>} : vector<32x32xbf16>, vector<32x32xbf16>, vector<32x32xf32> -> vector<32x32xf32>
    %c0_13 = arith.constant 0 : index
    %c0_14 = arith.constant 0 : index
    %19 = vector.load %arg7[%c0_13, %c0_14] : memref<1x32xf32, #tpu.memory_space<vmem>>, vector<1x32xf32>
    %20 = vector.broadcast %19 : vector<1x32xf32> to vector<32x32xf32>
    %21 = arith.addf %18, %20 : vector<32x32xf32>
    %22 = arith.truncf %6 : vector<32x32xf32> to vector<32x32xbf16>
    %c0_15 = arith.constant 0 : index
    %c0_16 = arith.constant 0 : index
    %23 = vector.load %arg8[%c0_15, %c0_16] : memref<32x32xbf16, #tpu.memory_space<vmem>>, vector<32x32xbf16>
    %cst_17 = arith.constant dense<0.000000e+00> : vector<32x32xf32>
    %24 = tpu.matmul %22, %23, %cst_17 {dimension_numbers = #tpu.dot_dimension_numbers<[1], [0], [0], [1], [0, 0, 1, 1], [], []>} : vector<32x32xbf16>, vector<32x32xbf16>, vector<32x32xf32> -> vector<32x32xf32>
    %c0_18 = arith.constant 0 : index
    %c0_19 = arith.constant 0 : index
    %25 = vector.load %arg9[%c0_18, %c0_19] : memref<1x32xf32, #tpu.memory_space<vmem>>, vector<1x32xf32>
    %26 = vector.broadcast %25 : vector<1x32xf32> to vector<32x32xf32>
    %27 = arith.addf %24, %26 : vector<32x32xf32>
    %c0_20 = arith.constant 0 : index
    %c0_21 = arith.constant 0 : index
    %c0_22 = arith.constant 0 : index
    %28 = vector.load %arg2[%c0_20, %c0_21, %c0_22] : memref<2x16x3xf32, #tpu.memory_space<vmem>>, vector<2x16x3xf32>
    %29 = vector.shape_cast %28 : vector<2x16x3xf32> to vector<32x3xf32>
    %c0_23 = arith.constant 0 : index
    %c0_24 = arith.constant 0 : index
    %30 = vector.load %arg10[%c0_23, %c0_24] : memref<3x16xf32, #tpu.memory_space<vmem>>, vector<3x16xf32>
    %31 = vector.extract_strided_slice %29 {offsets = [0, 0], sizes = [32, 1], strides = [1, 1]} : vector<32x3xf32> to vector<32x1xf32>
    %32 = vector.extract_strided_slice %30 {offsets = [0, 0], sizes = [1, 16], strides = [1, 1]} : vector<3x16xf32> to vector<1x16xf32>
    %33 = vector.broadcast %31 : vector<32x1xf32> to vector<32x16xf32>
    %34 = vector.broadcast %32 : vector<1x16xf32> to vector<32x16xf32>
    %35 = arith.mulf %33, %34 : vector<32x16xf32>
    %36 = vector.extract_strided_slice %29 {offsets = [0, 1], sizes = [32, 1], strides = [1, 1]} : vector<32x3xf32> to vector<32x1xf32>
    %37 = vector.extract_strided_slice %30 {offsets = [1, 0], sizes = [1, 16], strides = [1, 1]} : vector<3x16xf32> to vector<1x16xf32>
    %38 = vector.broadcast %36 : vector<32x1xf32> to vector<32x16xf32>
    %39 = vector.broadcast %37 : vector<1x16xf32> to vector<32x16xf32>
    %40 = arith.mulf %38, %39 : vector<32x16xf32>
    %41 = arith.addf %35, %40 : vector<32x16xf32>
    %42 = vector.extract_strided_slice %29 {offsets = [0, 2], sizes = [32, 1], strides = [1, 1]} : vector<32x3xf32> to vector<32x1xf32>
    %43 = vector.extract_strided_slice %30 {offsets = [2, 0], sizes = [1, 16], strides = [1, 1]} : vector<3x16xf32> to vector<1x16xf32>
    %44 = vector.broadcast %42 : vector<32x1xf32> to vector<32x16xf32>
    %45 = vector.broadcast %43 : vector<1x16xf32> to vector<32x16xf32>
    %46 = arith.mulf %44, %45 : vector<32x16xf32>
    %47 = arith.addf %41, %46 : vector<32x16xf32>
    %48 = vector.extract_strided_slice %15 {offsets = [0, 0], sizes = [16, 8], strides = [1, 1]} : vector<32x32xf32> to vector<16x8xf32>
    %49 = arith.truncf %48 : vector<16x8xf32> to vector<16x8xbf16>
    %50 = vector.extract_strided_slice %21 {offsets = [16, 0], sizes = [16, 8], strides = [1, 1]} : vector<32x32xf32> to vector<16x8xf32>
    %51 = arith.truncf %50 : vector<16x8xf32> to vector<16x8xbf16>
    %cst_25 = arith.constant dense<0.000000e+00> : vector<16x16xf32>
    %52 = tpu.matmul %49, %51, %cst_25 {dimension_numbers = #tpu.dot_dimension_numbers<[1], [1], [0], [0], [0, 0, 1, 0], [], []>} : vector<16x8xbf16>, vector<16x8xbf16>, vector<16x16xf32> -> vector<16x16xf32>
    %cst_26 = arith.constant dense<0xFF800000> : vector<16xf32>
    %53 = vector.multi_reduction <maximumf>, %52, %cst_26 [1] : vector<16x16xf32> to vector<16xf32>
    %54 = vector.shape_cast %53 : vector<16xf32> to vector<16x1xf32>
    %55 = vector.broadcast %54 : vector<16x1xf32> to vector<16x16xf32>
    %56 = arith.subf %52, %55 : vector<16x16xf32>
    %57 = math.exp %56 : vector<16x16xf32>
    %cst_27 = arith.constant dense<0.000000e+00> : vector<16xf32>
    %58 = vector.multi_reduction <add>, %57, %cst_27 [1] : vector<16x16xf32> to vector<16xf32>
    %59 = vector.shape_cast %58 : vector<16xf32> to vector<16x1xf32>
    %60 = tpu.reciprocal %59 {approx = true} : vector<16x1xf32> -> vector<16x1xf32>
    %61 = vector.broadcast %60 : vector<16x1xf32> to vector<16x16xf32>
    %62 = arith.mulf %57, %61 : vector<16x16xf32>
    %63 = arith.truncf %62 : vector<16x16xf32> to vector<16x16xbf16>
    %64 = vector.extract_strided_slice %27 {offsets = [16, 0], sizes = [16, 8], strides = [1, 1]} : vector<32x32xf32> to vector<16x8xf32>
    %65 = arith.truncf %64 : vector<16x8xf32> to vector<16x8xbf16>
    %cst_28 = arith.constant dense<0.000000e+00> : vector<16x8xf32>
    %66 = tpu.matmul %63, %65, %cst_28 {dimension_numbers = #tpu.dot_dimension_numbers<[1], [0], [0], [1], [0, 0, 1, 1], [], []>} : vector<16x16xbf16>, vector<16x8xbf16>, vector<16x8xf32> -> vector<16x8xf32>
    %c0_29 = arith.constant 0 : index
    %c0_30 = arith.constant 0 : index
    %67 = vector.load %arg22[%c0_29, %c0_30] : memref<32x32xf32, #tpu.memory_space<vmem>>, vector<16x8xf32>
    tpu.vector_store %arg22[%c0_29, %c0_30], %66 {strides = array<i32>} : memref<32x32xf32, #tpu.memory_space<vmem>>, vector<16x8xf32>,
    %68 = vector.extract_strided_slice %47 {offsets = [0, 0], sizes = [16, 4], strides = [1, 1]} : vector<32x16xf32> to vector<16x4xf32>
    %69 = arith.truncf %68 : vector<16x4xf32> to vector<16x4xbf16>
    %cst_31 = arith.constant dense<0.000000e+00> : vector<16x4xf32>
    %70 = tpu.matmul %63, %69, %cst_31 {dimension_numbers = #tpu.dot_dimension_numbers<[1], [0], [0], [1], [0, 0, 1, 1], [], []>} : vector<16x16xbf16>, vector<16x4xbf16>, vector<16x4xf32> -> vector<16x4xf32>
    %c0_32 = arith.constant 0 : index
    %c0_33 = arith.constant 0 : index
    %71 = vector.load %arg23[%c0_32, %c0_33] : memref<32x16xf32, #tpu.memory_space<vmem>>, vector<16x4xf32>
    tpu.vector_store %arg23[%c0_32, %c0_33], %70 {strides = array<i32>} : memref<32x16xf32, #tpu.memory_space<vmem>>, vector<16x4xf32>,
    %72 = vector.extract_strided_slice %15 {offsets = [0, 8], sizes = [16, 8], strides = [1, 1]} : vector<32x32xf32> to vector<16x8xf32>
    %73 = arith.truncf %72 : vector<16x8xf32> to vector<16x8xbf16>
    %74 = vector.extract_strided_slice %21 {offsets = [16, 8], sizes = [16, 8], strides = [1, 1]} : vector<32x32xf32> to vector<16x8xf32>
    %75 = arith.truncf %74 : vector<16x8xf32> to vector<16x8xbf16>
    %cst_34 = arith.constant dense<0.000000e+00> : vector<16x16xf32>
    %76 = tpu.matmul %73, %75, %cst_34 {dimension_numbers = #tpu.dot_dimension_numbers<[1], [1], [0], [0], [0, 0, 1, 0], [], []>} : vector<16x8xbf16>, vector<16x8xbf16>, vector<16x16xf32> -> vector<16x16xf32>
    %cst_35 = arith.constant dense<0xFF800000> : vector<16xf32>
    %77 = vector.multi_reduction <maximumf>, %76, %cst_35 [1] : vector<16x16xf32> to vector<16xf32>
    %78 = vector.shape_cast %77 : vector<16xf32> to vector<16x1xf32>
    %79 = vector.broadcast %78 : vector<16x1xf32> to vector<16x16xf32>
    %80 = arith.subf %76, %79 : vector<16x16xf32>
    %81 = math.exp %80 : vector<16x16xf32>
    %cst_36 = arith.constant dense<0.000000e+00> : vector<16xf32>
    %82 = vector.multi_reduction <add>, %81, %cst_36 [1] : vector<16x16xf32> to vector<16xf32>
    %83 = vector.shape_cast %82 : vector<16xf32> to vector<16x1xf32>
    %84 = tpu.reciprocal %83 {approx = true} : vector<16x1xf32> -> vector<16x1xf32>
    %85 = vector.broadcast %84 : vector<16x1xf32> to vector<16x16xf32>
    %86 = arith.mulf %81, %85 : vector<16x16xf32>
    %87 = arith.truncf %86 : vector<16x16xf32> to vector<16x16xbf16>
    %88 = vector.extract_strided_slice %27 {offsets = [16, 8], sizes = [16, 8], strides = [1, 1]} : vector<32x32xf32> to vector<16x8xf32>
    %89 = arith.truncf %88 : vector<16x8xf32> to vector<16x8xbf16>
    %cst_37 = arith.constant dense<0.000000e+00> : vector<16x8xf32>
    %90 = tpu.matmul %87, %89, %cst_37 {dimension_numbers = #tpu.dot_dimension_numbers<[1], [0], [0], [1], [0, 0, 1, 1], [], []>} : vector<16x16xbf16>, vector<16x8xbf16>, vector<16x8xf32> -> vector<16x8xf32>
    %c0_38 = arith.constant 0 : index
    %c8 = arith.constant 8 : index
    %91 = vector.load %arg22[%c0_38, %c8] : memref<32x32xf32, #tpu.memory_space<vmem>>, vector<16x8xf32>
    tpu.vector_store %arg22[%c0_38, %c8], %90 {strides = array<i32>} : memref<32x32xf32, #tpu.memory_space<vmem>>, vector<16x8xf32>,
    %92 = vector.extract_strided_slice %47 {offsets = [0, 4], sizes = [16, 4], strides = [1, 1]} : vector<32x16xf32> to vector<16x4xf32>
    %93 = arith.truncf %92 : vector<16x4xf32> to vector<16x4xbf16>
    %cst_39 = arith.constant dense<0.000000e+00> : vector<16x4xf32>
    %94 = tpu.matmul %87, %93, %cst_39 {dimension_numbers = #tpu.dot_dimension_numbers<[1], [0], [0], [1], [0, 0, 1, 1], [], []>} : vector<16x16xbf16>, vector<16x4xbf16>, vector<16x4xf32> -> vector<16x4xf32>
    %c0_40 = arith.constant 0 : index
    %c4 = arith.constant 4 : index
    %95 = vector.load %arg23[%c0_40, %c4] : memref<32x16xf32, #tpu.memory_space<vmem>>, vector<16x4xf32>
    tpu.vector_store %arg23[%c0_40, %c4], %94 {strides = array<i32>} : memref<32x16xf32, #tpu.memory_space<vmem>>, vector<16x4xf32>,
    %96 = vector.extract_strided_slice %15 {offsets = [0, 16], sizes = [16, 8], strides = [1, 1]} : vector<32x32xf32> to vector<16x8xf32>
    %97 = arith.truncf %96 : vector<16x8xf32> to vector<16x8xbf16>
    %98 = vector.extract_strided_slice %21 {offsets = [16, 16], sizes = [16, 8], strides = [1, 1]} : vector<32x32xf32> to vector<16x8xf32>
    %99 = arith.truncf %98 : vector<16x8xf32> to vector<16x8xbf16>
    %cst_41 = arith.constant dense<0.000000e+00> : vector<16x16xf32>
    %100 = tpu.matmul %97, %99, %cst_41 {dimension_numbers = #tpu.dot_dimension_numbers<[1], [1], [0], [0], [0, 0, 1, 0], [], []>} : vector<16x8xbf16>, vector<16x8xbf16>, vector<16x16xf32> -> vector<16x16xf32>
    %cst_42 = arith.constant dense<0xFF800000> : vector<16xf32>
    %101 = vector.multi_reduction <maximumf>, %100, %cst_42 [1] : vector<16x16xf32> to vector<16xf32>
    %102 = vector.shape_cast %101 : vector<16xf32> to vector<16x1xf32>
    %103 = vector.broadcast %102 : vector<16x1xf32> to vector<16x16xf32>
    %104 = arith.subf %100, %103 : vector<16x16xf32>
    %105 = math.exp %104 : vector<16x16xf32>
    %cst_43 = arith.constant dense<0.000000e+00> : vector<16xf32>
    %106 = vector.multi_reduction <add>, %105, %cst_43 [1] : vector<16x16xf32> to vector<16xf32>
    %107 = vector.shape_cast %106 : vector<16xf32> to vector<16x1xf32>
    %108 = tpu.reciprocal %107 {approx = true} : vector<16x1xf32> -> vector<16x1xf32>
    %109 = vector.broadcast %108 : vector<16x1xf32> to vector<16x16xf32>
    %110 = arith.mulf %105, %109 : vector<16x16xf32>
    %111 = arith.truncf %110 : vector<16x16xf32> to vector<16x16xbf16>
    %112 = vector.extract_strided_slice %27 {offsets = [16, 16], sizes = [16, 8], strides = [1, 1]} : vector<32x32xf32> to vector<16x8xf32>
    %113 = arith.truncf %112 : vector<16x8xf32> to vector<16x8xbf16>
    %cst_44 = arith.constant dense<0.000000e+00> : vector<16x8xf32>
    %114 = tpu.matmul %111, %113, %cst_44 {dimension_numbers = #tpu.dot_dimension_numbers<[1], [0], [0], [1], [0, 0, 1, 1], [], []>} : vector<16x16xbf16>, vector<16x8xbf16>, vector<16x8xf32> -> vector<16x8xf32>
    %c0_45 = arith.constant 0 : index
    %c16 = arith.constant 16 : index
    %115 = vector.load %arg22[%c0_45, %c16] : memref<32x32xf32, #tpu.memory_space<vmem>>, vector<16x8xf32>
    tpu.vector_store %arg22[%c0_45, %c16], %114 {strides = array<i32>} : memref<32x32xf32, #tpu.memory_space<vmem>>, vector<16x8xf32>,
    %116 = vector.extract_strided_slice %47 {offsets = [0, 8], sizes = [16, 4], strides = [1, 1]} : vector<32x16xf32> to vector<16x4xf32>
    %117 = arith.truncf %116 : vector<16x4xf32> to vector<16x4xbf16>
    %cst_46 = arith.constant dense<0.000000e+00> : vector<16x4xf32>
    %118 = tpu.matmul %111, %117, %cst_46 {dimension_numbers = #tpu.dot_dimension_numbers<[1], [0], [0], [1], [0, 0, 1, 1], [], []>} : vector<16x16xbf16>, vector<16x4xbf16>, vector<16x4xf32> -> vector<16x4xf32>
    %c0_47 = arith.constant 0 : index
    %c8_48 = arith.constant 8 : index
    %119 = vector.load %arg23[%c0_47, %c8_48] : memref<32x16xf32, #tpu.memory_space<vmem>>, vector<16x4xf32>
    tpu.vector_store %arg23[%c0_47, %c8_48], %118 {strides = array<i32>} : memref<32x16xf32, #tpu.memory_space<vmem>>, vector<16x4xf32>,
    %120 = vector.extract_strided_slice %15 {offsets = [0, 24], sizes = [16, 8], strides = [1, 1]} : vector<32x32xf32> to vector<16x8xf32>
    %121 = arith.truncf %120 : vector<16x8xf32> to vector<16x8xbf16>
    %122 = vector.extract_strided_slice %21 {offsets = [16, 24], sizes = [16, 8], strides = [1, 1]} : vector<32x32xf32> to vector<16x8xf32>
    %123 = arith.truncf %122 : vector<16x8xf32> to vector<16x8xbf16>
    %cst_49 = arith.constant dense<0.000000e+00> : vector<16x16xf32>
    %124 = tpu.matmul %121, %123, %cst_49 {dimension_numbers = #tpu.dot_dimension_numbers<[1], [1], [0], [0], [0, 0, 1, 0], [], []>} : vector<16x8xbf16>, vector<16x8xbf16>, vector<16x16xf32> -> vector<16x16xf32>
    %cst_50 = arith.constant dense<0xFF800000> : vector<16xf32>
    %125 = vector.multi_reduction <maximumf>, %124, %cst_50 [1] : vector<16x16xf32> to vector<16xf32>
    %126 = vector.shape_cast %125 : vector<16xf32> to vector<16x1xf32>
    %127 = vector.broadcast %126 : vector<16x1xf32> to vector<16x16xf32>
    %128 = arith.subf %124, %127 : vector<16x16xf32>
    %129 = math.exp %128 : vector<16x16xf32>
    %cst_51 = arith.constant dense<0.000000e+00> : vector<16xf32>
    %130 = vector.multi_reduction <add>, %129, %cst_51 [1] : vector<16x16xf32> to vector<16xf32>
    %131 = vector.shape_cast %130 : vector<16xf32> to vector<16x1xf32>
    %132 = tpu.reciprocal %131 {approx = true} : vector<16x1xf32> -> vector<16x1xf32>
    %133 = vector.broadcast %132 : vector<16x1xf32> to vector<16x16xf32>
    %134 = arith.mulf %129, %133 : vector<16x16xf32>
    %135 = arith.truncf %134 : vector<16x16xf32> to vector<16x16xbf16>
    %136 = vector.extract_strided_slice %27 {offsets = [16, 24], sizes = [16, 8], strides = [1, 1]} : vector<32x32xf32> to vector<16x8xf32>
    %137 = arith.truncf %136 : vector<16x8xf32> to vector<16x8xbf16>
    %cst_52 = arith.constant dense<0.000000e+00> : vector<16x8xf32>
    %138 = tpu.matmul %135, %137, %cst_52 {dimension_numbers = #tpu.dot_dimension_numbers<[1], [0], [0], [1], [0, 0, 1, 1], [], []>} : vector<16x16xbf16>, vector<16x8xbf16>, vector<16x8xf32> -> vector<16x8xf32>
    %c0_53 = arith.constant 0 : index
    %c24 = arith.constant 24 : index
    %139 = vector.load %arg22[%c0_53, %c24] : memref<32x32xf32, #tpu.memory_space<vmem>>, vector<16x8xf32>
    tpu.vector_store %arg22[%c0_53, %c24], %138 {strides = array<i32>} : memref<32x32xf32, #tpu.memory_space<vmem>>, vector<16x8xf32>,
    %140 = vector.extract_strided_slice %47 {offsets = [0, 12], sizes = [16, 4], strides = [1, 1]} : vector<32x16xf32> to vector<16x4xf32>
    %141 = arith.truncf %140 : vector<16x4xf32> to vector<16x4xbf16>
    %cst_54 = arith.constant dense<0.000000e+00> : vector<16x4xf32>
    %142 = tpu.matmul %135, %141, %cst_54 {dimension_numbers = #tpu.dot_dimension_numbers<[1], [0], [0], [1], [0, 0, 1, 1], [], []>} : vector<16x16xbf16>, vector<16x4xbf16>, vector<16x4xf32> -> vector<16x4xf32>
    %c0_55 = arith.constant 0 : index
    %c12 = arith.constant 12 : index
    %143 = vector.load %arg23[%c0_55, %c12] : memref<32x16xf32, #tpu.memory_space<vmem>>, vector<16x4xf32>
    tpu.vector_store %arg23[%c0_55, %c12], %142 {strides = array<i32>} : memref<32x16xf32, #tpu.memory_space<vmem>>, vector<16x4xf32>,
    %144 = vector.extract_strided_slice %15 {offsets = [16, 0], sizes = [16, 8], strides = [1, 1]} : vector<32x32xf32> to vector<16x8xf32>
    %145 = arith.truncf %144 : vector<16x8xf32> to vector<16x8xbf16>
    %146 = vector.extract_strided_slice %21 {offsets = [0, 0], sizes = [16, 8], strides = [1, 1]} : vector<32x32xf32> to vector<16x8xf32>
    %147 = arith.truncf %146 : vector<16x8xf32> to vector<16x8xbf16>
    %cst_56 = arith.constant dense<0.000000e+00> : vector<16x16xf32>
    %148 = tpu.matmul %145, %147, %cst_56 {dimension_numbers = #tpu.dot_dimension_numbers<[1], [1], [0], [0], [0, 0, 1, 0], [], []>} : vector<16x8xbf16>, vector<16x8xbf16>, vector<16x16xf32> -> vector<16x16xf32>
    %cst_57 = arith.constant dense<0xFF800000> : vector<16xf32>
    %149 = vector.multi_reduction <maximumf>, %148, %cst_57 [1] : vector<16x16xf32> to vector<16xf32>
    %150 = vector.shape_cast %149 : vector<16xf32> to vector<16x1xf32>
    %151 = vector.broadcast %150 : vector<16x1xf32> to vector<16x16xf32>
    %152 = arith.subf %148, %151 : vector<16x16xf32>
    %153 = math.exp %152 : vector<16x16xf32>
    %cst_58 = arith.constant dense<0.000000e+00> : vector<16xf32>
    %154 = vector.multi_reduction <add>, %153, %cst_58 [1] : vector<16x16xf32> to vector<16xf32>
    %155 = vector.shape_cast %154 : vector<16xf32> to vector<16x1xf32>
    %156 = tpu.reciprocal %155 {approx = true} : vector<16x1xf32> -> vector<16x1xf32>
    %157 = vector.broadcast %156 : vector<16x1xf32> to vector<16x16xf32>
    %158 = arith.mulf %153, %157 : vector<16x16xf32>
    %159 = arith.truncf %158 : vector<16x16xf32> to vector<16x16xbf16>
    %160 = vector.extract_strided_slice %27 {offsets = [0, 0], sizes = [16, 8], strides = [1, 1]} : vector<32x32xf32> to vector<16x8xf32>
    %161 = arith.truncf %160 : vector<16x8xf32> to vector<16x8xbf16>
    %cst_59 = arith.constant dense<0.000000e+00> : vector<16x8xf32>
    %162 = tpu.matmul %159, %161, %cst_59 {dimension_numbers = #tpu.dot_dimension_numbers<[1], [0], [0], [1], [0, 0, 1, 1], [], []>} : vector<16x16xbf16>, vector<16x8xbf16>, vector<16x8xf32> -> vector<16x8xf32>
    %c16_60 = arith.constant 16 : index
    %c0_61 = arith.constant 0 : index
    %163 = vector.load %arg22[%c16_60, %c0_61] : memref<32x32xf32, #tpu.memory_space<vmem>>, vector<16x8xf32>
    tpu.vector_store %arg22[%c16_60, %c0_61], %162 {strides = array<i32>} : memref<32x32xf32, #tpu.memory_space<vmem>>, vector<16x8xf32>,
    %164 = vector.extract_strided_slice %47 {offsets = [16, 0], sizes = [16, 4], strides = [1, 1]} : vector<32x16xf32> to vector<16x4xf32>
    %165 = arith.truncf %164 : vector<16x4xf32> to vector<16x4xbf16>
    %cst_62 = arith.constant dense<0.000000e+00> : vector<16x4xf32>
    %166 = tpu.matmul %159, %165, %cst_62 {dimension_numbers = #tpu.dot_dimension_numbers<[1], [0], [0], [1], [0, 0, 1, 1], [], []>} : vector<16x16xbf16>, vector<16x4xbf16>, vector<16x4xf32> -> vector<16x4xf32>
    %c16_63 = arith.constant 16 : index
    %c0_64 = arith.constant 0 : index
    %167 = vector.load %arg23[%c16_63, %c0_64] : memref<32x16xf32, #tpu.memory_space<vmem>>, vector<16x4xf32>
    tpu.vector_store %arg23[%c16_63, %c0_64], %166 {strides = array<i32>} : memref<32x16xf32, #tpu.memory_space<vmem>>, vector<16x4xf32>,
    %168 = vector.extract_strided_slice %15 {offsets = [16, 8], sizes = [16, 8], strides = [1, 1]} : vector<32x32xf32> to vector<16x8xf32>
    %169 = arith.truncf %168 : vector<16x8xf32> to vector<16x8xbf16>
    %170 = vector.extract_strided_slice %21 {offsets = [0, 8], sizes = [16, 8], strides = [1, 1]} : vector<32x32xf32> to vector<16x8xf32>
    %171 = arith.truncf %170 : vector<16x8xf32> to vector<16x8xbf16>
    %cst_65 = arith.constant dense<0.000000e+00> : vector<16x16xf32>
    %172 = tpu.matmul %169, %171, %cst_65 {dimension_numbers = #tpu.dot_dimension_numbers<[1], [1], [0], [0], [0, 0, 1, 0], [], []>} : vector<16x8xbf16>, vector<16x8xbf16>, vector<16x16xf32> -> vector<16x16xf32>
    %cst_66 = arith.constant dense<0xFF800000> : vector<16xf32>
    %173 = vector.multi_reduction <maximumf>, %172, %cst_66 [1] : vector<16x16xf32> to vector<16xf32>
    %174 = vector.shape_cast %173 : vector<16xf32> to vector<16x1xf32>
    %175 = vector.broadcast %174 : vector<16x1xf32> to vector<16x16xf32>
    %176 = arith.subf %172, %175 : vector<16x16xf32>
    %177 = math.exp %176 : vector<16x16xf32>
    %cst_67 = arith.constant dense<0.000000e+00> : vector<16xf32>
    %178 = vector.multi_reduction <add>, %177, %cst_67 [1] : vector<16x16xf32> to vector<16xf32>
    %179 = vector.shape_cast %178 : vector<16xf32> to vector<16x1xf32>
    %180 = tpu.reciprocal %179 {approx = true} : vector<16x1xf32> -> vector<16x1xf32>
    %181 = vector.broadcast %180 : vector<16x1xf32> to vector<16x16xf32>
    %182 = arith.mulf %177, %181 : vector<16x16xf32>
    %183 = arith.truncf %182 : vector<16x16xf32> to vector<16x16xbf16>
    %184 = vector.extract_strided_slice %27 {offsets = [0, 8], sizes = [16, 8], strides = [1, 1]} : vector<32x32xf32> to vector<16x8xf32>
    %185 = arith.truncf %184 : vector<16x8xf32> to vector<16x8xbf16>
    %cst_68 = arith.constant dense<0.000000e+00> : vector<16x8xf32>
    %186 = tpu.matmul %183, %185, %cst_68 {dimension_numbers = #tpu.dot_dimension_numbers<[1], [0], [0], [1], [0, 0, 1, 1], [], []>} : vector<16x16xbf16>, vector<16x8xbf16>, vector<16x8xf32> -> vector<16x8xf32>
    %c16_69 = arith.constant 16 : index
    %c8_70 = arith.constant 8 : index
    %187 = vector.load %arg22[%c16_69, %c8_70] : memref<32x32xf32, #tpu.memory_space<vmem>>, vector<16x8xf32>
    tpu.vector_store %arg22[%c16_69, %c8_70], %186 {strides = array<i32>} : memref<32x32xf32, #tpu.memory_space<vmem>>, vector<16x8xf32>,
    %188 = vector.extract_strided_slice %47 {offsets = [16, 4], sizes = [16, 4], strides = [1, 1]} : vector<32x16xf32> to vector<16x4xf32>
    %189 = arith.truncf %188 : vector<16x4xf32> to vector<16x4xbf16>
    %cst_71 = arith.constant dense<0.000000e+00> : vector<16x4xf32>
    %190 = tpu.matmul %183, %189, %cst_71 {dimension_numbers = #tpu.dot_dimension_numbers<[1], [0], [0], [1], [0, 0, 1, 1], [], []>} : vector<16x16xbf16>, vector<16x4xbf16>, vector<16x4xf32> -> vector<16x4xf32>
    %c16_72 = arith.constant 16 : index
    %c4_73 = arith.constant 4 : index
    %191 = vector.load %arg23[%c16_72, %c4_73] : memref<32x16xf32, #tpu.memory_space<vmem>>, vector<16x4xf32>
    tpu.vector_store %arg23[%c16_72, %c4_73], %190 {strides = array<i32>} : memref<32x16xf32, #tpu.memory_space<vmem>>, vector<16x4xf32>,
    %192 = vector.extract_strided_slice %15 {offsets = [16, 16], sizes = [16, 8], strides = [1, 1]} : vector<32x32xf32> to vector<16x8xf32>
    %193 = arith.truncf %192 : vector<16x8xf32> to vector<16x8xbf16>
    %194 = vector.extract_strided_slice %21 {offsets = [0, 16], sizes = [16, 8], strides = [1, 1]} : vector<32x32xf32> to vector<16x8xf32>
    %195 = arith.truncf %194 : vector<16x8xf32> to vector<16x8xbf16>
    %cst_74 = arith.constant dense<0.000000e+00> : vector<16x16xf32>
    %196 = tpu.matmul %193, %195, %cst_74 {dimension_numbers = #tpu.dot_dimension_numbers<[1], [1], [0], [0], [0, 0, 1, 0], [], []>} : vector<16x8xbf16>, vector<16x8xbf16>, vector<16x16xf32> -> vector<16x16xf32>
    %cst_75 = arith.constant dense<0xFF800000> : vector<16xf32>
    %197 = vector.multi_reduction <maximumf>, %196, %cst_75 [1] : vector<16x16xf32> to vector<16xf32>
    %198 = vector.shape_cast %197 : vector<16xf32> to vector<16x1xf32>
    %199 = vector.broadcast %198 : vector<16x1xf32> to vector<16x16xf32>
    %200 = arith.subf %196, %199 : vector<16x16xf32>
    %201 = math.exp %200 : vector<16x16xf32>
    %cst_76 = arith.constant dense<0.000000e+00> : vector<16xf32>
    %202 = vector.multi_reduction <add>, %201, %cst_76 [1] : vector<16x16xf32> to vector<16xf32>
    %203 = vector.shape_cast %202 : vector<16xf32> to vector<16x1xf32>
    %204 = tpu.reciprocal %203 {approx = true} : vector<16x1xf32> -> vector<16x1xf32>
    %205 = vector.broadcast %204 : vector<16x1xf32> to vector<16x16xf32>
    %206 = arith.mulf %201, %205 : vector<16x16xf32>
    %207 = arith.truncf %206 : vector<16x16xf32> to vector<16x16xbf16>
    %208 = vector.extract_strided_slice %27 {offsets = [0, 16], sizes = [16, 8], strides = [1, 1]} : vector<32x32xf32> to vector<16x8xf32>
    %209 = arith.truncf %208 : vector<16x8xf32> to vector<16x8xbf16>
    %cst_77 = arith.constant dense<0.000000e+00> : vector<16x8xf32>
    %210 = tpu.matmul %207, %209, %cst_77 {dimension_numbers = #tpu.dot_dimension_numbers<[1], [0], [0], [1], [0, 0, 1, 1], [], []>} : vector<16x16xbf16>, vector<16x8xbf16>, vector<16x8xf32> -> vector<16x8xf32>
    %c16_78 = arith.constant 16 : index
    %c16_79 = arith.constant 16 : index
    %211 = vector.load %arg22[%c16_78, %c16_79] : memref<32x32xf32, #tpu.memory_space<vmem>>, vector<16x8xf32>
    tpu.vector_store %arg22[%c16_78, %c16_79], %210 {strides = array<i32>} : memref<32x32xf32, #tpu.memory_space<vmem>>, vector<16x8xf32>,
    %212 = vector.extract_strided_slice %47 {offsets = [16, 8], sizes = [16, 4], strides = [1, 1]} : vector<32x16xf32> to vector<16x4xf32>
    %213 = arith.truncf %212 : vector<16x4xf32> to vector<16x4xbf16>
    %cst_80 = arith.constant dense<0.000000e+00> : vector<16x4xf32>
    %214 = tpu.matmul %207, %213, %cst_80 {dimension_numbers = #tpu.dot_dimension_numbers<[1], [0], [0], [1], [0, 0, 1, 1], [], []>} : vector<16x16xbf16>, vector<16x4xbf16>, vector<16x4xf32> -> vector<16x4xf32>
    %c16_81 = arith.constant 16 : index
    %c8_82 = arith.constant 8 : index
    %215 = vector.load %arg23[%c16_81, %c8_82] : memref<32x16xf32, #tpu.memory_space<vmem>>, vector<16x4xf32>
    tpu.vector_store %arg23[%c16_81, %c8_82], %214 {strides = array<i32>} : memref<32x16xf32, #tpu.memory_space<vmem>>, vector<16x4xf32>,
    %216 = vector.extract_strided_slice %15 {offsets = [16, 24], sizes = [16, 8], strides = [1, 1]} : vector<32x32xf32> to vector<16x8xf32>
    %217 = arith.truncf %216 : vector<16x8xf32> to vector<16x8xbf16>
    %218 = vector.extract_strided_slice %21 {offsets = [0, 24], sizes = [16, 8], strides = [1, 1]} : vector<32x32xf32> to vector<16x8xf32>
    %219 = arith.truncf %218 : vector<16x8xf32> to vector<16x8xbf16>
    %cst_83 = arith.constant dense<0.000000e+00> : vector<16x16xf32>
    %220 = tpu.matmul %217, %219, %cst_83 {dimension_numbers = #tpu.dot_dimension_numbers<[1], [1], [0], [0], [0, 0, 1, 0], [], []>} : vector<16x8xbf16>, vector<16x8xbf16>, vector<16x16xf32> -> vector<16x16xf32>
    %cst_84 = arith.constant dense<0xFF800000> : vector<16xf32>
    %221 = vector.multi_reduction <maximumf>, %220, %cst_84 [1] : vector<16x16xf32> to vector<16xf32>
    %222 = vector.shape_cast %221 : vector<16xf32> to vector<16x1xf32>
    %223 = vector.broadcast %222 : vector<16x1xf32> to vector<16x16xf32>
    %224 = arith.subf %220, %223 : vector<16x16xf32>
    %225 = math.exp %224 : vector<16x16xf32>
    %cst_85 = arith.constant dense<0.000000e+00> : vector<16xf32>
    %226 = vector.multi_reduction <add>, %225, %cst_85 [1] : vector<16x16xf32> to vector<16xf32>
    %227 = vector.shape_cast %226 : vector<16xf32> to vector<16x1xf32>
    %228 = tpu.reciprocal %227 {approx = true} : vector<16x1xf32> -> vector<16x1xf32>
    %229 = vector.broadcast %228 : vector<16x1xf32> to vector<16x16xf32>
    %230 = arith.mulf %225, %229 : vector<16x16xf32>
    %231 = arith.truncf %230 : vector<16x16xf32> to vector<16x16xbf16>
    %232 = vector.extract_strided_slice %27 {offsets = [0, 24], sizes = [16, 8], strides = [1, 1]} : vector<32x32xf32> to vector<16x8xf32>
    %233 = arith.truncf %232 : vector<16x8xf32> to vector<16x8xbf16>
    %cst_86 = arith.constant dense<0.000000e+00> : vector<16x8xf32>
    %234 = tpu.matmul %231, %233, %cst_86 {dimension_numbers = #tpu.dot_dimension_numbers<[1], [0], [0], [1], [0, 0, 1, 1], [], []>} : vector<16x16xbf16>, vector<16x8xbf16>, vector<16x8xf32> -> vector<16x8xf32>
    %c16_87 = arith.constant 16 : index
    %c24_88 = arith.constant 24 : index
    %235 = vector.load %arg22[%c16_87, %c24_88] : memref<32x32xf32, #tpu.memory_space<vmem>>, vector<16x8xf32>
    tpu.vector_store %arg22[%c16_87, %c24_88], %234 {strides = array<i32>} : memref<32x32xf32, #tpu.memory_space<vmem>>, vector<16x8xf32>,
    %236 = vector.extract_strided_slice %47 {offsets = [16, 12], sizes = [16, 4], strides = [1, 1]} : vector<32x16xf32> to vector<16x4xf32>
    %237 = arith.truncf %236 : vector<16x4xf32> to vector<16x4xbf16>
    %cst_89 = arith.constant dense<0.000000e+00> : vector<16x4xf32>
    %238 = tpu.matmul %231, %237, %cst_89 {dimension_numbers = #tpu.dot_dimension_numbers<[1], [0], [0], [1], [0, 0, 1, 1], [], []>} : vector<16x16xbf16>, vector<16x4xbf16>, vector<16x4xf32> -> vector<16x4xf32>
    %c16_90 = arith.constant 16 : index
    %c12_91 = arith.constant 12 : index
    %239 = vector.load %arg23[%c16_90, %c12_91] : memref<32x16xf32, #tpu.memory_space<vmem>>, vector<16x4xf32>
    tpu.vector_store %arg23[%c16_90, %c12_91], %238 {strides = array<i32>} : memref<32x16xf32, #tpu.memory_space<vmem>>, vector<16x4xf32>,
    %c0_92 = arith.constant 0 : index
    %c0_93 = arith.constant 0 : index
    %240 = vector.load %arg22[%c0_92, %c0_93] : memref<32x32xf32, #tpu.memory_space<vmem>>, vector<32x32xf32>
    %241 = arith.truncf %240 : vector<32x32xf32> to vector<32x32xbf16>
    %c0_94 = arith.constant 0 : index
    %c0_95 = arith.constant 0 : index
    %242 = vector.load %arg11[%c0_94, %c0_95] : memref<32x32xbf16, #tpu.memory_space<vmem>>, vector<32x32xbf16>
    %cst_96 = arith.constant dense<0.000000e+00> : vector<32x32xf32>
    %243 = tpu.matmul %241, %242, %cst_96 {dimension_numbers = #tpu.dot_dimension_numbers<[1], [0], [0], [1], [0, 0, 1, 1], [], []>} : vector<32x32xbf16>, vector<32x32xbf16>, vector<32x32xf32> -> vector<32x32xf32>
    %c0_97 = arith.constant 0 : index
    %c0_98 = arith.constant 0 : index
    %244 = vector.load %arg12[%c0_97, %c0_98] : memref<1x32xf32, #tpu.memory_space<vmem>>, vector<1x32xf32>
    %245 = vector.broadcast %244 : vector<1x32xf32> to vector<32x32xf32>
    %246 = arith.addf %243, %245 : vector<32x32xf32>
    %c0_99 = arith.constant 0 : index
    %c0_100 = arith.constant 0 : index
    %247 = vector.load %arg23[%c0_99, %c0_100] : memref<32x16xf32, #tpu.memory_space<vmem>>, vector<32x16xf32>
    %248 = arith.subf %247, %47 : vector<32x16xf32>
    %249 = arith.truncf %248 : vector<32x16xf32> to vector<32x16xbf16>
    %c0_101 = arith.constant 0 : index
    %c0_102 = arith.constant 0 : index
    %250 = vector.load %arg13[%c0_101, %c0_102] : memref<16x16xbf16, #tpu.memory_space<vmem>>, vector<16x16xbf16>
    %cst_103 = arith.constant dense<0.000000e+00> : vector<32x16xf32>
    %251 = tpu.matmul %249, %250, %cst_103 {dimension_numbers = #tpu.dot_dimension_numbers<[1], [0], [0], [1], [0, 0, 1, 1], [], []>} : vector<32x16xbf16>, vector<16x16xbf16>, vector<32x16xf32> -> vector<32x16xf32>
    %c0_104 = arith.constant 0 : index
    %c0_105 = arith.constant 0 : index
    %252 = vector.load %arg14[%c0_104, %c0_105] : memref<1x16xf32, #tpu.memory_space<vmem>>, vector<1x16xf32>
    %253 = vector.broadcast %252 : vector<1x16xf32> to vector<32x16xf32>
    %254 = arith.addf %251, %253 : vector<32x16xf32>
    %255 = arith.addf %12, %246 : vector<32x32xf32>
    %256 = arith.truncf %255 : vector<32x32xf32> to vector<32x32xbf16>
    %c0_106 = arith.constant 0 : index
    %c0_107 = arith.constant 0 : index
    %257 = vector.load %arg15[%c0_106, %c0_107] : memref<32x128xbf16, #tpu.memory_space<vmem>>, vector<32x128xbf16>
    %cst_108 = arith.constant dense<0.000000e+00> : vector<32x128xf32>
    %258 = tpu.matmul %256, %257, %cst_108 {dimension_numbers = #tpu.dot_dimension_numbers<[1], [0], [0], [1], [0, 0, 1, 1], [], []>} : vector<32x32xbf16>, vector<32x128xbf16>, vector<32x128xf32> -> vector<32x128xf32>
    %c0_109 = arith.constant 0 : index
    %c0_110 = arith.constant 0 : index
    %259 = vector.load %arg16[%c0_109, %c0_110] : memref<1x128xf32, #tpu.memory_space<vmem>>, vector<1x128xf32>
    %260 = vector.broadcast %259 : vector<1x128xf32> to vector<32x128xf32>
    %261 = arith.addf %258, %260 : vector<32x128xf32>
    %c0_111 = arith.constant 0 : index
    %262 = memref.load %arg17[%c0_111] : memref<1xf32, #tpu.memory_space<smem>>
    %cst_112 = arith.constant 0.000000e+00 : f32
    %263 = vector.broadcast %cst_112 : f32 to vector<32x128xf32>
    %264 = arith.cmpf oge, %261, %263 : vector<32x128xf32>
    %265 = vector.broadcast %262 : f32 to vector<32x128xf32>
    %266 = arith.mulf %265, %261 : vector<32x128xf32>
    %267 = arith.select %264, %261, %266 : vector<32x128xi1>, vector<32x128xf32>
    %268 = arith.truncf %267 : vector<32x128xf32> to vector<32x128xbf16>
    %c0_113 = arith.constant 0 : index
    %c0_114 = arith.constant 0 : index
    %269 = vector.load %arg18[%c0_113, %c0_114] : memref<128x32xbf16, #tpu.memory_space<vmem>>, vector<128x32xbf16>
    %cst_115 = arith.constant dense<0.000000e+00> : vector<32x32xf32>
    %270 = tpu.matmul %268, %269, %cst_115 {dimension_numbers = #tpu.dot_dimension_numbers<[1], [0], [0], [1], [0, 0, 1, 1], [], []>} : vector<32x128xbf16>, vector<128x32xbf16>, vector<32x32xf32> -> vector<32x32xf32>
    %c0_116 = arith.constant 0 : index
    %c0_117 = arith.constant 0 : index
    %271 = vector.load %arg19[%c0_116, %c0_117] : memref<1x32xf32, #tpu.memory_space<vmem>>, vector<1x32xf32>
    %272 = vector.broadcast %271 : vector<1x32xf32> to vector<32x32xf32>
    %273 = arith.addf %270, %272 : vector<32x32xf32>
    %274 = vector.extract_strided_slice %273 {offsets = [0, 0], sizes = [16, 32], strides = [1, 1]} : vector<32x32xf32> to vector<16x32xf32>
    %275 = tpu.transpose %274, [1, 0] : vector<16x32xf32> -> vector<32x16xf32>
    %c0_118 = arith.constant 0 : index
    %c0_119 = arith.constant 0 : index
    %c0_120 = arith.constant 0 : index
    %276 = vector.load %arg1[%c0_118, %c0_119, %c0_120] : memref<2x32x16xf32, #tpu.memory_space<vmem>>, vector<1x32x16xf32>
    %277 = vector.shape_cast %276 : vector<1x32x16xf32> to vector<32x16xf32>
    %278 = arith.addf %277, %275 : vector<32x16xf32>
    %c0_121 = arith.constant 0 : index
    %c0_122 = arith.constant 0 : index
    %c0_123 = arith.constant 0 : index
    %279 = vector.load %arg20[%c0_121, %c0_122, %c0_123] : memref<2x32x16xf32, #tpu.memory_space<vmem>>, vector<1x32x16xf32>
    %280 = vector.shape_cast %279 : vector<1x32x16xf32> to vector<32x16xf32>
    %281 = vector.shape_cast %278 : vector<32x16xf32> to vector<1x32x16xf32>
    tpu.vector_store %arg20[%c0_121, %c0_122, %c0_123], %281 {strides = array<i32>} : memref<2x32x16xf32, #tpu.memory_space<vmem>>, vector<1x32x16xf32>,
    %282 = vector.extract_strided_slice %273 {offsets = [16, 0], sizes = [16, 32], strides = [1, 1]} : vector<32x32xf32> to vector<16x32xf32>
    %283 = tpu.transpose %282, [1, 0] : vector<16x32xf32> -> vector<32x16xf32>
    %c1_124 = arith.constant 1 : index
    %c0_125 = arith.constant 0 : index
    %c0_126 = arith.constant 0 : index
    %284 = vector.load %arg1[%c1_124, %c0_125, %c0_126] : memref<2x32x16xf32, #tpu.memory_space<vmem>>, vector<1x32x16xf32>
    %285 = vector.shape_cast %284 : vector<1x32x16xf32> to vector<32x16xf32>
    %286 = arith.addf %285, %283 : vector<32x16xf32>
    %c1_127 = arith.constant 1 : index
    %c0_128 = arith.constant 0 : index
    %c0_129 = arith.constant 0 : index
    %287 = vector.load %arg20[%c1_127, %c0_128, %c0_129] : memref<2x32x16xf32, #tpu.memory_space<vmem>>, vector<1x32x16xf32>
    %288 = vector.shape_cast %287 : vector<1x32x16xf32> to vector<32x16xf32>
    %289 = vector.shape_cast %286 : vector<32x16xf32> to vector<1x32x16xf32>
    tpu.vector_store %arg20[%c1_127, %c0_128, %c0_129], %289 {strides = array<i32>} : memref<2x32x16xf32, #tpu.memory_space<vmem>>, vector<1x32x16xf32>,
    %290 = vector.shape_cast %254 : vector<32x16xf32> to vector<2x16x16xf32>
    %c0_130 = arith.constant 0 : index
    %c0_131 = arith.constant 0 : index
    %c0_132 = arith.constant 0 : index
    %291 = vector.load %arg21[%c0_130, %c0_131, %c0_132] : memref<2x16x16xf32, #tpu.memory_space<vmem>>, vector<2x16x16xf32>
    tpu.vector_store %arg21[%c0_130, %c0_131, %c0_132], %290 {strides = array<i32>} : memref<2x16x16xf32, #tpu.memory_space<vmem>>, vector<2x16x16xf32>,
    return
  }
  func.func @transform_0(%arg0: i32) -> (i32, i32, i32) {
    %c0_i32 = arith.constant 0 : i32
    %c0_i32_0 = arith.constant 0 : i32
    %c0_i32_1 = arith.constant 0 : i32
    return %arg0, %c0_i32, %c0_i32_0 : i32, i32, i32
  }
  func.func @transform_1(%arg0: i32) -> (i32, i32, i32) {
    %c0_i32 = arith.constant 0 : i32
    %c0_i32_0 = arith.constant 0 : i32
    %c0_i32_1 = arith.constant 0 : i32
    return %arg0, %c0_i32, %c0_i32_0 : i32, i32, i32
  }
  func.func @transform_2(%arg0: i32) -> (i32, i32) {
    %c0_i32 = arith.constant 0 : i32
    %c0_i32_0 = arith.constant 0 : i32
    %c0_i32_1 = arith.constant 0 : i32
    return %c0_i32, %c0_i32_0 : i32, i32
  }
  func.func @transform_3(%arg0: i32) -> (i32, i32) {
    %c0_i32 = arith.constant 0 : i32
    %c0_i32_0 = arith.constant 0 : i32
    %c0_i32_1 = arith.constant 0 : i32
    return %c0_i32, %c0_i32_0 : i32, i32
  }
  func.func @transform_4(%arg0: i32) -> (i32, i32) {
    %c0_i32 = arith.constant 0 : i32
    %c0_i32_0 = arith.constant 0 : i32
    %c0_i32_1 = arith.constant 0 : i32
    return %c0_i32, %c0_i32_0 : i32, i32
  }
  func.func @transform_5(%arg0: i32) -> (i32, i32) {
    %c0_i32 = arith.constant 0 : i32
    %c0_i32_0 = arith.constant 0 : i32
    %c0_i32_1 = arith.constant 0 : i32
    return %c0_i32, %c0_i32_0 : i32, i32
  }
  func.func @transform_6(%arg0: i32) -> (i32, i32) {
    %c0_i32 = arith.constant 0 : i32
    %c0_i32_0 = arith.constant 0 : i32
    %c0_i32_1 = arith.constant 0 : i32
    return %c0_i32, %c0_i32_0 : i32, i32
  }
  func.func @transform_7(%arg0: i32) -> (i32, i32) {
    %c0_i32 = arith.constant 0 : i32
    %c0_i32_0 = arith.constant 0 : i32
    %c0_i32_1 = arith.constant 0 : i32
    return %c0_i32, %c0_i32_0 : i32, i32
  }
  func.func @transform_8(%arg0: i32) -> (i32, i32) {
    %c0_i32 = arith.constant 0 : i32
    %c0_i32_0 = arith.constant 0 : i32
    %c0_i32_1 = arith.constant 0 : i32
    return %c0_i32, %c0_i32_0 : i32, i32
  }
  func.func @transform_9(%arg0: i32) -> (i32, i32) {
    %c0_i32 = arith.constant 0 : i32
    %c0_i32_0 = arith.constant 0 : i32
    %c0_i32_1 = arith.constant 0 : i32
    return %c0_i32, %c0_i32_0 : i32, i32
  }
  func.func @transform_10(%arg0: i32) -> (i32, i32) {
    %c0_i32 = arith.constant 0 : i32
    %c0_i32_0 = arith.constant 0 : i32
    %c0_i32_1 = arith.constant 0 : i32
    return %c0_i32, %c0_i32_0 : i32, i32
  }
  func.func @transform_11(%arg0: i32) -> (i32, i32) {
    %c0_i32 = arith.constant 0 : i32
    %c0_i32_0 = arith.constant 0 : i32
    %c0_i32_1 = arith.constant 0 : i32
    return %c0_i32, %c0_i32_0 : i32, i32
  }
  func.func @transform_12(%arg0: i32) -> (i32, i32) {
    %c0_i32 = arith.constant 0 : i32
    %c0_i32_0 = arith.constant 0 : i32
    %c0_i32_1 = arith.constant 0 : i32
    return %c0_i32, %c0_i32_0 : i32, i32
  }
  func.func @transform_13(%arg0: i32) -> (i32, i32) {
    %c0_i32 = arith.constant 0 : i32
    %c0_i32_0 = arith.constant 0 : i32
    %c0_i32_1 = arith.constant 0 : i32
    return %c0_i32, %c0_i32_0 : i32, i32
  }
  func.func @transform_14(%arg0: i32) -> (i32, i32) {
    %c0_i32 = arith.constant 0 : i32
    %c0_i32_0 = arith.constant 0 : i32
    %c0_i32_1 = arith.constant 0 : i32
    return %c0_i32, %c0_i32_0 : i32, i32
  }
  func.func @transform_15(%arg0: i32) -> (i32, i32) {
    %c0_i32 = arith.constant 0 : i32
    %c0_i32_0 = arith.constant 0 : i32
    %c0_i32_1 = arith.constant 0 : i32
    return %c0_i32, %c0_i32_0 : i32, i32
  }
  func.func @transform_16(%arg0: i32) -> i32 {
    %c0_i32 = arith.constant 0 : i32
    %c0_i32_0 = arith.constant 0 : i32
    return %c0_i32 : i32
  }
  func.func @transform_17(%arg0: i32) -> (i32, i32) {
    %c0_i32 = arith.constant 0 : i32
    %c0_i32_0 = arith.constant 0 : i32
    %c0_i32_1 = arith.constant 0 : i32
    return %c0_i32, %c0_i32_0 : i32, i32
  }
  func.func @transform_18(%arg0: i32) -> (i32, i32) {
    %c0_i32 = arith.constant 0 : i32
    %c0_i32_0 = arith.constant 0 : i32
    %c0_i32_1 = arith.constant 0 : i32
    return %c0_i32, %c0_i32_0 : i32, i32
  }
  func.func @transform_19(%arg0: i32) -> (i32, i32, i32) {
    %c0_i32 = arith.constant 0 : i32
    %c0_i32_0 = arith.constant 0 : i32
    %c0_i32_1 = arith.constant 0 : i32
    return %arg0, %c0_i32, %c0_i32_0 : i32, i32, i32
  }
  func.func @transform_20(%arg0: i32) -> (i32, i32, i32) {
    %c0_i32 = arith.constant 0 : i32
    %c0_i32_0 = arith.constant 0 : i32
    %c0_i32_1 = arith.constant 0 : i32
    return %arg0, %c0_i32, %c0_i32_0 : i32, i32, i32
  }
}

</mosaic_0001>

<llo_original>
// kernel: tpu_custom_call.1
$region0: #{tpu_custom_call.1}
  #allocation0 [shape = 'u32[]', space=smem, size = 0x4, offset = 0x4, fixed_abs, tag = 'smem constant byte address 0x4 - core index']
  #allocation1 [shape = 'u32[72,128]{1,0:T(1,128)}', space=vmem, size = 0x9000, scoped, tag = 'internal scratch']
  #allocation2 [shape = 'f32[32,32]{1,0:T(8,128)}', space=vmem, size = 0x4000, scoped, tag = 'scratch operand']
  #allocation3 [shape = 'f32[32,16]{1,0:T(8,128)}', space=vmem, size = 0x4000, scoped, tag = 'scratch operand']
  #allocation4 [shape = 'f32[1]{0:T(128)S(6)}', space=smem, size = 0x200, scoped, tag = 'scoped memory for tpu_custom_call.1']
  %s0 = inlined_call_operand.vmem [shape: f32[2,32,16], index: 0, kind: input, shape index: {}]
  %s1 = inlined_call_operand.vmem [shape: f32[2,16,3], index: 1, kind: input, shape index: {}]
  %s2 = inlined_call_operand.vmem [shape: f32[1,32], index: 2, kind: input, shape index: {}]
  %s3 = inlined_call_operand.vmem [shape: f32[1,32], index: 3, kind: input, shape index: {}]
  %s4 = inlined_call_operand.vmem [shape: bf16[32,32], index: 4, kind: input, shape index: {}]
  %s5 = inlined_call_operand.vmem [shape: bf16[32,32], index: 5, kind: input, shape index: {}]
  %s6 = inlined_call_operand.vmem [shape: f32[1,32], index: 6, kind: input, shape index: {}]
  %s7 = inlined_call_operand.vmem [shape: bf16[32,32], index: 7, kind: input, shape index: {}]
  %s8 = inlined_call_operand.vmem [shape: f32[1,32], index: 8, kind: input, shape index: {}]
  %s9 = inlined_call_operand.vmem [shape: f32[3,16], index: 9, kind: input, shape index: {}]
  %s10 = inlined_call_operand.vmem [shape: bf16[32,32], index: 10, kind: input, shape index: {}]
  %s11 = inlined_call_operand.vmem [shape: f32[1,32], index: 11, kind: input, shape index: {}]
  %s12 = inlined_call_operand.vmem [shape: bf16[16,16], index: 12, kind: input, shape index: {}]
  %s13 = inlined_call_operand.vmem [shape: f32[1,16], index: 13, kind: input, shape index: {}]
  %s14 = inlined_call_operand.vmem [shape: bf16[32,128], index: 14, kind: input, shape index: {}]
  %s15 = inlined_call_operand.vmem [shape: f32[1,128], index: 15, kind: input, shape index: {}]
  %s16 = inlined_call_operand.<no memory space> [shape: f32[1], index: 16, kind: input, shape index: {}]
  %s17 = inlined_call_operand.vmem [shape: bf16[128,32], index: 17, kind: input, shape index: {}]
  %s18 = inlined_call_operand.vmem [shape: f32[1,32], index: 18, kind: input, shape index: {}]
  %s19 = inlined_call_operand.vmem [shape: f32[2,32,16], index: 19, kind: output, shape index: {0}]
  %s20 = inlined_call_operand.hbm [shape: f32[2,16,16], index: 20, kind: output, shape index: {1}]
  %21 = xla_tuple %s19, %s20
  %s22 = sld [smem:[#allocation0]]
  $region94: #{tpu_custom_call.1} parent=0
    _
  %s24 = ssub.s32 1, %s22
  %s25 = scalar_select 0, %s24, %s22
  %26 = sst [smem:[#allocation4]] %s16
  $region1: #{tpu_custom_call.1} parent=0
    #allocation5 [shape = 'u8[16384]{0}', space=vmem, size = 0x4000, scoped, tag = 'output window, operand 1, single buffered']
    #allocation6 [shape = 's32[1]{0}', space=sflag, size = 0x4, scoped, tag = 'scoped memory for tpu_custom_call.1']
    %27 = vsyncpa [#allocation6], 0
    // Predicated region
    $region2: #{tpu_custom_call.1} parent=1 // pred_check
      _
    $region3: #{tpu_custom_call.1} parent=1 // pred_check_branch
      %29 = sbr.rel (0) target = $region5
    $region4: #{tpu_custom_call.1} parent=1 // pred_region
      _
    $region5: #{tpu_custom_call.1} parent=1 // pred_fallthru
      _
    // Predicated region
    $region6: #{tpu_custom_call.1} parent=1 // pred_check
      _
    $region7: #{tpu_custom_call.1} parent=1 // pred_check_branch
      %31 = sbr.rel (0) target = $region9
    $region8: #{tpu_custom_call.1} parent=1 // pred_region
      _
    $region9: #{tpu_custom_call.1} parent=1 // pred_fallthru
      _
    // Predicated region
    $region10: #{tpu_custom_call.1} parent=1 // pred_check
      _
    $region11: #{tpu_custom_call.1} parent=1 // pred_check_branch
      %33 = sbr.rel (0) target = $region13
    $region12: #{tpu_custom_call.1} parent=1 // pred_region
      _
    $region13: #{tpu_custom_call.1} parent=1 // pred_fallthru
      _
    // Predicated region
    $region14: #{tpu_custom_call.1} parent=1 // pred_check
      _
    $region15: #{tpu_custom_call.1} parent=1 // pred_check_branch
      %35 = sbr.rel (0) target = $region17
    $region16: #{tpu_custom_call.1} parent=1 // pred_region
      _
    $region17: #{tpu_custom_call.1} parent=1 // pred_fallthru
      _
    // Predicated region
    $region18: #{tpu_custom_call.1} parent=1 // pred_check
      _
    $region19: #{tpu_custom_call.1} parent=1 // pred_check_branch
      %37 = sbr.rel (0) target = $region21
    $region20: #{tpu_custom_call.1} parent=1 // pred_region
      _
    $region21: #{tpu_custom_call.1} parent=1 // pred_fallthru
      _
    // Predicated region
    $region22: #{tpu_custom_call.1} parent=1 // pred_check
      _
    $region23: #{tpu_custom_call.1} parent=1 // pred_check_branch
      %39 = sbr.rel (0) target = $region25
    $region24: #{tpu_custom_call.1} parent=1 // pred_region
      _
    $region25: #{tpu_custom_call.1} parent=1 // pred_fallthru
      _
    // Predicated region
    $region26: #{tpu_custom_call.1} parent=1 // pred_check
      _
    $region27: #{tpu_custom_call.1} parent=1 // pred_check_branch
      %41 = sbr.rel (0) target = $region29
    $region28: #{tpu_custom_call.1} parent=1 // pred_region
      _
    $region29: #{tpu_custom_call.1} parent=1 // pred_fallthru
      _
    // Predicated region
    $region30: #{tpu_custom_call.1} parent=1 // pred_check
      _
    $region31: #{tpu_custom_call.1} parent=1 // pred_check_branch
      %43 = sbr.rel (0) target = $region33
    $region32: #{tpu_custom_call.1} parent=1 // pred_region
      _
    $region33: #{tpu_custom_call.1} parent=1 // pred_fallthru
      _
    // Predicated region
    $region34: #{tpu_custom_call.1} parent=1 // pred_check
      _
    $region35: #{tpu_custom_call.1} parent=1 // pred_check_branch
      %45 = sbr.rel (0) target = $region37
    $region36: #{tpu_custom_call.1} parent=1 // pred_region
      _
    $region37: #{tpu_custom_call.1} parent=1 // pred_fallthru
      _
    // Predicated region
    $region38: #{tpu_custom_call.1} parent=1 // pred_check
      _
    $region39: #{tpu_custom_call.1} parent=1 // pred_check_branch
      %47 = sbr.rel (0) target = $region41
    $region40: #{tpu_custom_call.1} parent=1 // pred_region
      _
    $region41: #{tpu_custom_call.1} parent=1 // pred_fallthru
      _
    // Predicated region
    $region42: #{tpu_custom_call.1} parent=1 // pred_check
      _
    $region43: #{tpu_custom_call.1} parent=1 // pred_check_branch
      %49 = sbr.rel (0) target = $region45
    $region44: #{tpu_custom_call.1} parent=1 // pred_region
      _
    $region45: #{tpu_custom_call.1} parent=1 // pred_fallthru
      _
    // Predicated region
    $region46: #{tpu_custom_call.1} parent=1 // pred_check
      _
    $region47: #{tpu_custom_call.1} parent=1 // pred_check_branch
      %51 = sbr.rel (0) target = $region49
    $region48: #{tpu_custom_call.1} parent=1 // pred_region
      _
    $region49: #{tpu_custom_call.1} parent=1 // pred_fallthru
      _
    // Predicated region
    $region50: #{tpu_custom_call.1} parent=1 // pred_check
      _
    $region51: #{tpu_custom_call.1} parent=1 // pred_check_branch
      %53 = sbr.rel (0) target = $region53
    $region52: #{tpu_custom_call.1} parent=1 // pred_region
      _
    $region53: #{tpu_custom_call.1} parent=1 // pred_fallthru
      _
    // Predicated region
    $region54: #{tpu_custom_call.1} parent=1 // pred_check
      _
    $region55: #{tpu_custom_call.1} parent=1 // pred_check_branch
      %55 = sbr.rel (0) target = $region57
    $region56: #{tpu_custom_call.1} parent=1 // pred_region
      _
    $region57: #{tpu_custom_call.1} parent=1 // pred_fallthru
      _
    // Predicated region
    $region58: #{tpu_custom_call.1} parent=1 // pred_check
      _
    $region59: #{tpu_custom_call.1} parent=1 // pred_check_branch
      %57 = sbr.rel (0) target = $region61
    $region60: #{tpu_custom_call.1} parent=1 // pred_region
      _
    $region61: #{tpu_custom_call.1} parent=1 // pred_fallthru
      _
    // Predicated region
    $region62: #{tpu_custom_call.1} parent=1 // pred_check
      _
    $region63: #{tpu_custom_call.1} parent=1 // pred_check_branch
      %59 = sbr.rel (0) target = $region65
    $region64: #{tpu_custom_call.1} parent=1 // pred_region
      _
    $region65: #{tpu_custom_call.1} parent=1 // pred_fallthru
      _
    // Predicated region
    $region66: #{tpu_custom_call.1} parent=1 // pred_check
      _
    $region67: #{tpu_custom_call.1} parent=1 // pred_check_branch
      %61 = sbr.rel (0) target = $region69
    $region68: #{tpu_custom_call.1} parent=1 // pred_region
      _
    $region69: #{tpu_custom_call.1} parent=1 // pred_fallthru
      _
    // Predicated region
    $region70: #{tpu_custom_call.1} parent=1 // pred_check
      _
    $region71: #{tpu_custom_call.1} parent=1 // pred_check_branch
      %63 = sbr.rel (0) target = $region73
    $region72: #{tpu_custom_call.1} parent=1 // pred_region
      _
    $region73: #{tpu_custom_call.1} parent=1 // pred_fallthru
      _
    // Predicated region
    $region74: #{tpu_custom_call.1} parent=1 // pred_check
      _
    $region75: #{tpu_custom_call.1} parent=1 // pred_check_branch
      %65 = sbr.rel (0) target = $region77
    $region76: #{tpu_custom_call.1} parent=1 // pred_region
      _
    $region77: #{tpu_custom_call.1} parent=1 // pred_fallthru
      _
    %v67 = vld [vmem:[%s0] sm:$0xff]
    %v68 = vld [vmem:[%s0 + $0x8] sm:$0xff]
    %v69 = vld [vmem:[%s0 + $0x10] sm:$0xff]
    %v70 = vld [vmem:[%s0 + $0x18] sm:$0xff]
    %71 = vxpose.xlu0.b32.start [1/16] %v67, 128
    %72 = vxpose.xlu0.b32.cont [2/16] %v68, 128
    %73 = vxpose.xlu0.b32.cont [3/16] %v69, 128
    %74 = vxpose.xlu0.b32.cont [4/16] %v70, 128
    %75 = vxpose.xlu0.b32.cont [5/16] 0.0, 128
    %76 = vxpose.xlu0.b32.cont [6/16] 0.0, 128
    %77 = vxpose.xlu0.b32.cont [7/16] 0.0, 128
    %78 = vxpose.xlu0.b32.cont [8/16] 0.0, 128
    %79 = vxpose.xlu0.b32.cont [9/16] 0.0, 128
    %80 = vxpose.xlu0.b32.cont [10/16] 0.0, 128
    %81 = vxpose.xlu0.b32.cont [11/16] 0.0, 128
    %82 = vxpose.xlu0.b32.cont [12/16] 0.0, 128
    %83 = vxpose.xlu0.b32.cont [13/16] 0.0, 128
    %84 = vxpose.xlu0.b32.cont [14/16] 0.0, 128
    %85 = vxpose.xlu0.b32.cont [15/16] 0.0, 128
    %86 = vxpose.xlu0.b32.end [16/16] 0.0, 128
    %v87 = vpop.trf.xlu0
    %v88 = vpop.trf.xlu0
    %v89 = vpop.trf.xlu0
    %v90 = vpop.trf.xlu0
    %v91 = vpop.trf.xlu0
    %v92 = vpop.trf.xlu0
    %v93 = vpop.trf.xlu0
    %v94 = vpop.trf.xlu0
    %v95 = vpop.trf.xlu0
    %v96 = vpop.trf.xlu0
    %v97 = vpop.trf.xlu0
    %v98 = vpop.trf.xlu0
    %v99 = vpop.trf.xlu0
    %v100 = vpop.trf.xlu0
    %v101 = vpop.trf.xlu0
    %v102 = vpop.trf.xlu0
    %s103 = scalar_lea.vmem %s0, 32
    %v104 = vld [vmem:[%s103] sm:$0xff]
    %v105 = vld [vmem:[%s103 + $0x8] sm:$0xff]
    %v106 = vld [vmem:[%s103 + $0x10] sm:$0xff]
    %v107 = vld [vmem:[%s103 + $0x18] sm:$0xff]
    %108 = vxpose.xlu0.b32.start [1/16] %v104, 128
    %109 = vxpose.xlu0.b32.cont [2/16] %v105, 128
    %110 = vxpose.xlu0.b32.cont [3/16] %v106, 128
    %111 = vxpose.xlu0.b32.cont [4/16] %v107, 128
    %112 = vxpose.xlu0.b32.cont [5/16] 0.0, 128
    %113 = vxpose.xlu0.b32.cont [6/16] 0.0, 128
    %114 = vxpose.xlu0.b32.cont [7/16] 0.0, 128
    %115 = vxpose.xlu0.b32.cont [8/16] 0.0, 128
    %116 = vxpose.xlu0.b32.cont [9/16] 0.0, 128
    %117 = vxpose.xlu0.b32.cont [10/16] 0.0, 128
    %118 = vxpose.xlu0.b32.cont [11/16] 0.0, 128
    %119 = vxpose.xlu0.b32.cont [12/16] 0.0, 128
    %120 = vxpose.xlu0.b32.cont [13/16] 0.0, 128
    %121 = vxpose.xlu0.b32.cont [14/16] 0.0, 128
    %122 = vxpose.xlu0.b32.cont [15/16] 0.0, 128
    %123 = vxpose.xlu0.b32.end [16/16] 0.0, 128
    %v124 = vpop.trf.xlu0
    %v125 = vpop.trf.xlu0
    %v126 = vpop.trf.xlu0
    %v127 = vpop.trf.xlu0
    %v128 = vpop.trf.xlu0
    %v129 = vpop.trf.xlu0
    %v130 = vpop.trf.xlu0
    %v131 = vpop.trf.xlu0
    %v132 = vpop.trf.xlu0
    %v133 = vpop.trf.xlu0
    %v134 = vpop.trf.xlu0
    %v135 = vpop.trf.xlu0
    %v136 = vpop.trf.xlu0
    %v137 = vpop.trf.xlu0
    %v138 = vpop.trf.xlu0
    %v139 = vpop.trf.xlu0
    %v140 = vld [vmem:[%s2] sm:$0x1]
    %v142 = vperm.slane %v140, 0
    %v144 = vmul.f32 %v87, %v142
    %v145 = vmul.f32 %v88, %v142
    %v146 = vmul.f32 %v124, %v142
    %v147 = vmul.f32 %v125, %v142
    %v148 = vld [vmem:[%s3] sm:$0x1]
    %v150 = vperm.slane %v148, 0
    %v152 = vadd.f32 %v144, %v150
    %v153 = vadd.f32 %v145, %v150
    %v154 = vadd.f32 %v146, %v150
    %v155 = vadd.f32 %v147, %v150
    %v156 = vpack.c.bf16 %v153, %v152
    %v157 = vpack.c.bf16 %v155, %v154
    %v158 = vld [vmem:[%s4] sm:$0xf]
    %v159 = vld [vmem:[%s4 + $0x4] sm:$0xf]
    %v160 = vld [vmem:[%s4 + $0x8] sm:$0xf]
    %v161 = vld [vmem:[%s4 + $0xc] sm:$0xf]
    %v166 = vunpack.c.l.b16 %v158
    %v167 = vunpack.c.l.b16 %v159
    %v168 = vunpack.c.l.b16 %v160
    %v169 = vunpack.c.l.b16 %v161
    %v170 = vpack.c.b16 %v167, %v166
    %v171 = vpack.c.b16 %v169, %v168
    %vm174 = vcmask 261120
    %v176 = vsel %vm174, %v156, 0
    %v179 = vsel %vm174, %v157, 0
    %181 = vmatpush.bf16.msra.mxu0 0
    %182 = vmatpush.bf16.msra.mxu0 0
    %183 = vmatpush.bf16.msra.mxu0 0
    %184 = vmatpush.bf16.msra.mxu0 0
    %185 = vmatpush.bf16.msra.mxu0 0
    %186 = vmatpush.bf16.msra.mxu0 0
    %187 = vmatpush.bf16.msra.mxu0 %v171
    %188 = vmatpush.bf16.msra.mxu0 %v170
    %189 = vmatmul.bf16.gmra.mxu0 %v176
    %v190 = vpop.f32.mrf.mxu0
    %v191 = vadd.f32 0.0, %v190
    %v192 = vpop.f32.mrf.mxu0
    %v193 = vadd.f32 0.0, %v192
    %194 = vmatmul.bf16.gmra.mxu0 %v179
    %v195 = vpop.f32.mrf.mxu0
    %v196 = vadd.f32 0.0, %v195
    %v197 = vpop.f32.mrf.mxu0
    %v198 = vadd.f32 0.0, %v197
    %199 = vdwg.mxu0
    %v200 = vpack.c.bf16 %v88, %v87
    %v201 = vpack.c.bf16 %v125, %v124
    %v202 = vld [vmem:[%s5] sm:$0xf]
    %v203 = vld [vmem:[%s5 + $0x4] sm:$0xf]
    %v204 = vld [vmem:[%s5 + $0x8] sm:$0xf]
    %v205 = vld [vmem:[%s5 + $0xc] sm:$0xf]
    %v206 = vld [vmem:[%s6] sm:$0x1]
    %v208 = vperm.slane %v206, 0
    %v214 = vunpack.c.l.b16 %v202
    %v215 = vunpack.c.l.b16 %v203
    %v216 = vunpack.c.l.b16 %v204
    %v217 = vunpack.c.l.b16 %v205
    %v218 = vpack.c.b16 %v215, %v214
    %v219 = vpack.c.b16 %v217, %v216
    %v223 = vsel %vm174, %v200, 0
    %v226 = vsel %vm174, %v201, 0
    %228 = vmatpush.bf16.msra.mxu0 0
    %229 = vmatpush.bf16.msra.mxu0 0
    %230 = vmatpush.bf16.msra.mxu0 0
    %231 = vmatpush.bf16.msra.mxu0 0
    %232 = vmatpush.bf16.msra.mxu0 0
    %233 = vmatpush.bf16.msra.mxu0 0
    %234 = vmatpush.bf16.msra.mxu0 %v219
    %235 = vmatpush.bf16.msra.mxu0 %v218
    %236 = vmatmul.bf16.gmra.mxu0 %v223
    %v237 = vpop.f32.mrf.mxu0
    %v238 = vadd.f32 %v208, %v237
    %v239 = vpop.f32.mrf.mxu0
    %v240 = vadd.f32 %v208, %v239
    %241 = vmatmul.bf16.gmra.mxu0 %v226
    %v242 = vpop.f32.mrf.mxu0
    %v243 = vadd.f32 %v208, %v242
    %v244 = vpop.f32.mrf.mxu0
    %v245 = vadd.f32 %v208, %v244
    %246 = vdwg.mxu0
    %v247 = vld [vmem:[%s7] sm:$0xf]
    %v248 = vld [vmem:[%s7 + $0x4] sm:$0xf]
    %v249 = vld [vmem:[%s7 + $0x8] sm:$0xf]
    %v250 = vld [vmem:[%s7 + $0xc] sm:$0xf]
    %v251 = vld [vmem:[%s8] sm:$0x1]
    %v253 = vperm.slane %v251, 0
    %v259 = vunpack.c.l.b16 %v247
    %v260 = vunpack.c.l.b16 %v248
    %v261 = vunpack.c.l.b16 %v249
    %v262 = vunpack.c.l.b16 %v250
    %v263 = vpack.c.b16 %v260, %v259
    %v264 = vpack.c.b16 %v262, %v261
    %267 = vmatpush.bf16.msra.mxu0 0
    %268 = vmatpush.bf16.msra.mxu0 0
    %269 = vmatpush.bf16.msra.mxu0 0
    %270 = vmatpush.bf16.msra.mxu0 0
    %271 = vmatpush.bf16.msra.mxu0 0
    %272 = vmatpush.bf16.msra.mxu0 0
    %273 = vmatpush.bf16.msra.mxu0 %v264
    %274 = vmatpush.bf16.msra.mxu0 %v263
    %275 = vmatmul.bf16.gmra.mxu0 %v223
    %v276 = vpop.f32.mrf.mxu0
    %v277 = vadd.f32 %v253, %v276
    %v278 = vpop.f32.mrf.mxu0
    %v279 = vadd.f32 %v253, %v278
    %280 = vmatmul.bf16.gmra.mxu0 %v226
    %v281 = vpop.f32.mrf.mxu0
    %v282 = vadd.f32 %v253, %v281
    %v283 = vpop.f32.mrf.mxu0
    %v284 = vadd.f32 %v253, %v283
    %285 = vdwg.mxu0
    %v286 = vld [vmem:[%s1] sm:$0xff]
    %v287 = vld [vmem:[%s1 + $0x8] sm:$0xff]
    %v288 = vld [vmem:[%s1 + $0x10] sm:$0xff]
    %v289 = vld [vmem:[%s1 + $0x18] sm:$0xff]
    %v290 = vld [vmem:[%s9] sm:$0x7]
    %292 = vset.pattern.permute.xlu0 0
    %293 = vperm.xlu0 %292, %v286
    %v294 = vpop.permute.xlu0 %293
    %297 = vset.pattern.permute.xlu0 0
    %298 = vperm.xlu0 %297, %v287
    %v299 = vpop.permute.xlu0 %298
    %302 = vset.pattern.permute.xlu0 0
    %303 = vperm.xlu0 %302, %v288
    %v304 = vpop.permute.xlu0 %303
    %307 = vset.pattern.permute.xlu0 0
    %308 = vperm.xlu0 %307, %v289
    %v309 = vpop.permute.xlu0 %308
    %v311 = vperm.slane %v290, 0
    %v312 = vmul.f32 %v294, %v311
    %v313 = vmul.f32 %v299, %v311
    %v314 = vmul.f32 %v304, %v311
    %v315 = vmul.f32 %v309, %v311
    %316 = vset.pattern.permute.xlu0 1
    %317 = vperm.xlu0 %316, %v286
    %v318 = vpop.permute.xlu0 %317
    %320 = vset.pattern.permute.xlu0 1
    %321 = vperm.xlu0 %320, %v287
    %v322 = vpop.permute.xlu0 %321
    %324 = vset.pattern.permute.xlu0 1
    %325 = vperm.xlu0 %324, %v288
    %v326 = vpop.permute.xlu0 %325
    %328 = vset.pattern.permute.xlu0 1
    %329 = vperm.xlu0 %328, %v289
    %v330 = vpop.permute.xlu0 %329
    %v332 = vperm.slane %v290, 1
    %v333 = vmul.f32 %v318, %v332
    %v334 = vmul.f32 %v322, %v332
    %v335 = vmul.f32 %v326, %v332
    %v336 = vmul.f32 %v330, %v332
    %v337 = vadd.f32 %v312, %v333
    %v338 = vadd.f32 %v313, %v334
    %v339 = vadd.f32 %v314, %v335
    %v340 = vadd.f32 %v315, %v336
    %341 = vset.pattern.permute.xlu0 2
    %342 = vperm.xlu0 %341, %v286
    %v343 = vpop.permute.xlu0 %342
    %345 = vset.pattern.permute.xlu0 2
    %346 = vperm.xlu0 %345, %v287
    %v347 = vpop.permute.xlu0 %346
    %349 = vset.pattern.permute.xlu0 2
    %350 = vperm.xlu0 %349, %v288
    %v351 = vpop.permute.xlu0 %350
    %353 = vset.pattern.permute.xlu0 2
    %354 = vperm.xlu0 %353, %v289
    %v355 = vpop.permute.xlu0 %354
    %v357 = vperm.slane %v290, 2
    %v358 = vmul.f32 %v343, %v357
    %v359 = vmul.f32 %v347, %v357
    %v360 = vmul.f32 %v351, %v357
    %v361 = vmul.f32 %v355, %v357
    %v362 = vadd.f32 %v337, %v358
    %v363 = vadd.f32 %v338, %v359
    %v364 = vadd.f32 %v339, %v360
    %v365 = vadd.f32 %v340, %v361
    %v366 = vpack.c.bf16 %v193, %v191
    %v367 = vpack.c.bf16 %v245, %v243
    %vm368 = vcmask 64512
    %v370 = vsel %vm368, %v366, 0
    %v373 = vsel %vm368, %v367, 0
    %375 = vmatpush.bf16.xpose.msra.mxu0 0
    %376 = vmatpush.bf16.xpose.msra.mxu0 0
    %377 = vmatpush.bf16.xpose.msra.mxu0 0
    %378 = vmatpush.bf16.xpose.msra.mxu0 0
    %379 = vmatpush.bf16.xpose.msra.mxu0 0
    %380 = vmatpush.bf16.xpose.msra.mxu0 0
    %381 = vmatpush.bf16.xpose.msra.mxu0 0
    %382 = vmatpush.bf16.xpose.msra.mxu0 %v373
    %383 = vmatmul.bf16.gmra.mxu0 %v370
    %v384 = vpop.f32.mrf.mxu0
    %v385 = vadd.f32 0.0, %v384
    %v386 = vpop.f32.mrf.mxu0
    %v387 = vadd.f32 0.0, %v386
    %388 = vdwg.mxu0
    %vm389 = vcmask 130048
    %v390 = vsel %vm389, %v385, -inf
    %391 = vmax.xlane.f32.xlu0 %v390
    %v392 = vpop.xlane.xlu0 %391
    %v393 = vsel %vm389, %v387, -inf
    %394 = vmax.xlane.f32.xlu0 %v393
    %v395 = vpop.xlane.xlu0 %394
    %v396 = vsub.f32 %v385, %v392
    %v397 = vsub.f32 %v387, %v395
    %v398 = vmul.f32 %v396, 1.442695
    %v399 = vpow.pop %v398
    %v400 = vmul.f32 %v397, 1.442695
    %v401 = vpow.pop %v400
    %v402 = vsel %vm389, %v399, 0.0
    %403 = vadd.xlane.f32.xlu0 %v402
    %v404 = vpop.xlane.xlu0 %403
    %v405 = vsel %vm389, %v401, 0.0
    %406 = vadd.xlane.f32.xlu0 %v405
    %v407 = vpop.xlane.xlu0 %406
    %v408 = vrcp.pop %v404
    %v409 = vrcp.pop %v407
    %v410 = vmul.f32 %v399, %v408
    %v411 = vmul.f32 %v401, %v409
    %v412 = vpack.c.bf16 %v411, %v410
    %v413 = vpack.c.bf16 %v284, %v282
    %v415 = vsel %vm389, %v412, 0
    %417 = vmatpush.bf16.msra.mxu0 0
    %418 = vmatpush.bf16.msra.mxu0 0
    %419 = vmatpush.bf16.msra.mxu0 0
    %420 = vmatpush.bf16.msra.mxu0 0
    %421 = vmatpush.bf16.msra.mxu0 0
    %422 = vmatpush.bf16.msra.mxu0 0
    %423 = vmatpush.bf16.msra.mxu0 0
    %424 = vmatpush.bf16.msra.mxu0 %v413
    %425 = vmatmul.bf16.gmra.mxu0 %v415
    %v426 = vpop.f32.mrf.mxu0
    %v427 = vadd.f32 0.0, %v426
    %v428 = vpop.f32.mrf.mxu0
    %v429 = vadd.f32 0.0, %v428
    %430 = vdwg.mxu0
    %431 = vst.msk [vmem:[#allocation2] sm:$0xff] %vm368, %v427
    %432 = vst.msk [vmem:[#allocation2 + $0x8] sm:$0xff] %vm368, %v429
    %v433 = vpack.c.bf16 %v363, %v362
    %434 = vmatpush.bf16.msra.mxu0 0
    %435 = vmatpush.bf16.msra.mxu0 0
    %436 = vmatpush.bf16.msra.mxu0 0
    %437 = vmatpush.bf16.msra.mxu0 0
    %438 = vmatpush.bf16.msra.mxu0 0
    %439 = vmatpush.bf16.msra.mxu0 0
    %440 = vmatpush.bf16.msra.mxu0 0
    %441 = vmatpush.bf16.msra.mxu0 %v433
    %442 = vmatmul.bf16.gmra.mxu0 %v415
    %v443 = vpop.f32.mrf.mxu0
    %v444 = vadd.f32 0.0, %v443
    %v445 = vpop.f32.mrf.mxu0
    %v446 = vadd.f32 0.0, %v445
    %447 = vdwg.mxu0
    %vm448 = vcmask 31744
    %449 = vst.msk [vmem:[#allocation3] sm:$0xff] %vm448, %v444
    %450 = vst.msk [vmem:[#allocation3 + $0x8] sm:$0xff] %vm448, %v446
    %452 = vrot.lane.b32.xlu0 %v366, 120
    %v453 = vpop.permute.xlu0 %452
    %455 = vrot.lane.b32.xlu0 %v367, 120
    %v456 = vpop.permute.xlu0 %455
    %v458 = vsel %vm368, %v453, 0
    %v461 = vsel %vm368, %v456, 0
    %463 = vmatpush.bf16.xpose.msra.mxu0 0
    %464 = vmatpush.bf16.xpose.msra.mxu0 0
    %465 = vmatpush.bf16.xpose.msra.mxu0 0
    %466 = vmatpush.bf16.xpose.msra.mxu0 0
    %467 = vmatpush.bf16.xpose.msra.mxu0 0
    %468 = vmatpush.bf16.xpose.msra.mxu0 0
    %469 = vmatpush.bf16.xpose.msra.mxu0 0
    %470 = vmatpush.bf16.xpose.msra.mxu0 %v461
    %471 = vmatmul.bf16.gmra.mxu0 %v458
    %v472 = vpop.f32.mrf.mxu0
    %v473 = vadd.f32 0.0, %v472
    %v474 = vpop.f32.mrf.mxu0
    %v475 = vadd.f32 0.0, %v474
    %476 = vdwg.mxu0
    %v477 = vsel %vm389, %v473, -inf
    %478 = vmax.xlane.f32.xlu0 %v477
    %v479 = vpop.xlane.xlu0 %478
    %v480 = vsel %vm389, %v475, -inf
    %481 = vmax.xlane.f32.xlu0 %v480
    %v482 = vpop.xlane.xlu0 %481
    %v483 = vsub.f32 %v473, %v479
    %v484 = vsub.f32 %v475, %v482
    %v485 = vmul.f32 %v483, 1.442695
    %v486 = vpow.pop %v485
    %v487 = vmul.f32 %v484, 1.442695
    %v488 = vpow.pop %v487
    %v489 = vsel %vm389, %v486, 0.0
    %490 = vadd.xlane.f32.xlu0 %v489
    %v491 = vpop.xlane.xlu0 %490
    %v492 = vsel %vm389, %v488, 0.0
    %493 = vadd.xlane.f32.xlu0 %v492
    %v494 = vpop.xlane.xlu0 %493
    %v495 = vrcp.pop %v491
    %v496 = vrcp.pop %v494
    %v497 = vmul.f32 %v486, %v495
    %v498 = vmul.f32 %v488, %v496
    %v499 = vpack.c.bf16 %v498, %v497
    %501 = vrot.lane.b32.xlu0 %v413, 120
    %v502 = vpop.permute.xlu0 %501
    %v505 = vsel %vm389, %v499, 0
    %507 = vmatpush.bf16.msra.mxu0 0
    %508 = vmatpush.bf16.msra.mxu0 0
    %509 = vmatpush.bf16.msra.mxu0 0
    %510 = vmatpush.bf16.msra.mxu0 0
    %511 = vmatpush.bf16.msra.mxu0 0
    %512 = vmatpush.bf16.msra.mxu0 0
    %513 = vmatpush.bf16.msra.mxu0 0
    %514 = vmatpush.bf16.msra.mxu0 %v502
    %515 = vmatmul.bf16.gmra.mxu0 %v505
    %v516 = vpop.f32.mrf.mxu0
    %v517 = vadd.f32 0.0, %v516
    %v518 = vpop.f32.mrf.mxu0
    %v519 = vadd.f32 0.0, %v518
    %520 = vdwg.mxu0
    %523 = vrot.lane.b32.xlu0 %v517, 8
    %v524 = vpop.permute.xlu0 %523
    %525 = vrot.lane.b32.xlu0 %v519, 8
    %v526 = vpop.permute.xlu0 %525
    %vm529 = vcmask 130112
    %530 = vst.msk [vmem:[#allocation2] sm:$0xff] %vm529, %v524
    %531 = vst.msk [vmem:[#allocation2 + $0x8] sm:$0xff] %vm529, %v526
    %533 = vrot.lane.b32.xlu0 %v433, 124
    %v534 = vpop.permute.xlu0 %533
    %536 = vmatpush.bf16.msra.mxu0 0
    %537 = vmatpush.bf16.msra.mxu0 0
    %538 = vmatpush.bf16.msra.mxu0 0
    %539 = vmatpush.bf16.msra.mxu0 0
    %540 = vmatpush.bf16.msra.mxu0 0
    %541 = vmatpush.bf16.msra.mxu0 0
    %542 = vmatpush.bf16.msra.mxu0 0
    %543 = vmatpush.bf16.msra.mxu0 %v534
    %544 = vmatmul.bf16.gmra.mxu0 %v505
    %v545 = vpop.f32.mrf.mxu0
    %v546 = vadd.f32 0.0, %v545
    %v547 = vpop.f32.mrf.mxu0
    %v548 = vadd.f32 0.0, %v547
    %549 = vdwg.mxu0
    %552 = vrot.lane.b32.xlu0 %v546, 4
    %v553 = vpop.permute.xlu0 %552
    %554 = vrot.lane.b32.xlu0 %v548, 4
    %v555 = vpop.permute.xlu0 %554
    %vm558 = vcmask 64544
    %559 = vst.msk [vmem:[#allocation3] sm:$0xff] %vm558, %v553
    %560 = vst.msk [vmem:[#allocation3 + $0x8] sm:$0xff] %vm558, %v555
    %561 = vrot.lane.b32.xlu0 %v366, 112
    %v562 = vpop.permute.xlu0 %561
    %563 = vrot.lane.b32.xlu0 %v367, 112
    %v564 = vpop.permute.xlu0 %563
    %v566 = vsel %vm368, %v562, 0
    %v569 = vsel %vm368, %v564, 0
    %571 = vmatpush.bf16.xpose.msra.mxu0 0
    %572 = vmatpush.bf16.xpose.msra.mxu0 0
    %573 = vmatpush.bf16.xpose.msra.mxu0 0
    %574 = vmatpush.bf16.xpose.msra.mxu0 0
    %575 = vmatpush.bf16.xpose.msra.mxu0 0
    %576 = vmatpush.bf16.xpose.msra.mxu0 0
    %577 = vmatpush.bf16.xpose.msra.mxu0 0
    %578 = vmatpush.bf16.xpose.msra.mxu0 %v569
    %579 = vmatmul.bf16.gmra.mxu0 %v566
    %v580 = vpop.f32.mrf.mxu0
    %v581 = vadd.f32 0.0, %v580
    %v582 = vpop.f32.mrf.mxu0
    %v583 = vadd.f32 0.0, %v582
    %584 = vdwg.mxu0
    %v585 = vsel %vm389, %v581, -inf
    %586 = vmax.xlane.f32.xlu0 %v585
    %v587 = vpop.xlane.xlu0 %586
    %v588 = vsel %vm389, %v583, -inf
    %589 = vmax.xlane.f32.xlu0 %v588
    %v590 = vpop.xlane.xlu0 %589
    %v591 = vsub.f32 %v581, %v587
    %v592 = vsub.f32 %v583, %v590
    %v593 = vmul.f32 %v591, 1.442695
    %v594 = vpow.pop %v593
    %v595 = vmul.f32 %v592, 1.442695
    %v596 = vpow.pop %v595
    %v597 = vsel %vm389, %v594, 0.0
    %598 = vadd.xlane.f32.xlu0 %v597
    %v599 = vpop.xlane.xlu0 %598
    %v600 = vsel %vm389, %v596, 0.0
    %601 = vadd.xlane.f32.xlu0 %v600
    %v602 = vpop.xlane.xlu0 %601
    %v603 = vrcp.pop %v599
    %v604 = vrcp.pop %v602
    %v605 = vmul.f32 %v594, %v603
    %v606 = vmul.f32 %v596, %v604
    %v607 = vpack.c.bf16 %v606, %v605
    %608 = vrot.lane.b32.xlu0 %v413, 112
    %v609 = vpop.permute.xlu0 %608
    %v612 = vsel %vm389, %v607, 0
    %614 = vmatpush.bf16.msra.mxu0 0
    %615 = vmatpush.bf16.msra.mxu0 0
    %616 = vmatpush.bf16.msra.mxu0 0
    %617 = vmatpush.bf16.msra.mxu0 0
    %618 = vmatpush.bf16.msra.mxu0 0
    %619 = vmatpush.bf16.msra.mxu0 0
    %620 = vmatpush.bf16.msra.mxu0 0
    %621 = vmatpush.bf16.msra.mxu0 %v609
    %622 = vmatmul.bf16.gmra.mxu0 %v612
    %v623 = vpop.f32.mrf.mxu0
    %v624 = vadd.f32 0.0, %v623
    %v625 = vpop.f32.mrf.mxu0
    %v626 = vadd.f32 0.0, %v625
    %627 = vdwg.mxu0
    %630 = vrot.lane.b32.xlu0 %v624, 16
    %v631 = vpop.permute.xlu0 %630
    %632 = vrot.lane.b32.xlu0 %v626, 16
    %v633 = vpop.permute.xlu0 %632
    %vm636 = vcmask 195712
    %637 = vst.msk [vmem:[#allocation2] sm:$0xff] %vm636, %v631
    %638 = vst.msk [vmem:[#allocation2 + $0x8] sm:$0xff] %vm636, %v633
    %639 = vrot.lane.b32.xlu0 %v433, 120
    %v640 = vpop.permute.xlu0 %639
    %642 = vmatpush.bf16.msra.mxu0 0
    %643 = vmatpush.bf16.msra.mxu0 0
    %644 = vmatpush.bf16.msra.mxu0 0
    %645 = vmatpush.bf16.msra.mxu0 0
    %646 = vmatpush.bf16.msra.mxu0 0
    %647 = vmatpush.bf16.msra.mxu0 0
    %648 = vmatpush.bf16.msra.mxu0 0
    %649 = vmatpush.bf16.msra.mxu0 %v640
    %650 = vmatmul.bf16.gmra.mxu0 %v612
    %v651 = vpop.f32.mrf.mxu0
    %v652 = vadd.f32 0.0, %v651
    %v653 = vpop.f32.mrf.mxu0
    %v654 = vadd.f32 0.0, %v653
    %655 = vdwg.mxu0
    %658 = vrot.lane.b32.xlu0 %v652, 8
    %v659 = vpop.permute.xlu0 %658
    %660 = vrot.lane.b32.xlu0 %v654, 8
    %v661 = vpop.permute.xlu0 %660
    %vm664 = vcmask 97344
    %665 = vst.msk [vmem:[#allocation3] sm:$0xff] %vm664, %v659
    %666 = vst.msk [vmem:[#allocation3 + $0x8] sm:$0xff] %vm664, %v661
    %667 = vrot.lane.b32.xlu0 %v366, 104
    %v668 = vpop.permute.xlu0 %667
    %669 = vrot.lane.b32.xlu0 %v367, 104
    %v670 = vpop.permute.xlu0 %669
    %v672 = vsel %vm368, %v668, 0
    %v675 = vsel %vm368, %v670, 0
    %677 = vmatpush.bf16.xpose.msra.mxu0 0
    %678 = vmatpush.bf16.xpose.msra.mxu0 0
    %679 = vmatpush.bf16.xpose.msra.mxu0 0
    %680 = vmatpush.bf16.xpose.msra.mxu0 0
    %681 = vmatpush.bf16.xpose.msra.mxu0 0
    %682 = vmatpush.bf16.xpose.msra.mxu0 0
    %683 = vmatpush.bf16.xpose.msra.mxu0 0
    %684 = vmatpush.bf16.xpose.msra.mxu0 %v675
    %685 = vmatmul.bf16.gmra.mxu0 %v672
    %v686 = vpop.f32.mrf.mxu0
    %v687 = vadd.f32 0.0, %v686
    %v688 = vpop.f32.mrf.mxu0
    %v689 = vadd.f32 0.0, %v688
    %690 = vdwg.mxu0
    %v691 = vsel %vm389, %v687, -inf
    %692 = vmax.xlane.f32.xlu0 %v691
    %v693 = vpop.xlane.xlu0 %692
    %v694 = vsel %vm389, %v689, -inf
    %695 = vmax.xlane.f32.xlu0 %v694
    %v696 = vpop.xlane.xlu0 %695
    %v697 = vsub.f32 %v687, %v693
    %v698 = vsub.f32 %v689, %v696
    %v699 = vmul.f32 %v697, 1.442695
    %v700 = vpow.pop %v699
    %v701 = vmul.f32 %v698, 1.442695
    %v702 = vpow.pop %v701
    %v703 = vsel %vm389, %v700, 0.0
    %704 = vadd.xlane.f32.xlu0 %v703
    %v705 = vpop.xlane.xlu0 %704
    %v706 = vsel %vm389, %v702, 0.0
    %707 = vadd.xlane.f32.xlu0 %v706
    %v708 = vpop.xlane.xlu0 %707
    %v709 = vrcp.pop %v705
    %v710 = vrcp.pop %v708
    %v711 = vmul.f32 %v700, %v709
    %v712 = vmul.f32 %v702, %v710
    %v713 = vpack.c.bf16 %v712, %v711
    %714 = vrot.lane.b32.xlu0 %v413, 104
    %v715 = vpop.permute.xlu0 %714
    %v718 = vsel %vm389, %v713, 0
    %720 = vmatpush.bf16.msra.mxu0 0
    %721 = vmatpush.bf16.msra.mxu0 0
    %722 = vmatpush.bf16.msra.mxu0 0
    %723 = vmatpush.bf16.msra.mxu0 0
    %724 = vmatpush.bf16.msra.mxu0 0
    %725 = vmatpush.bf16.msra.mxu0 0
    %726 = vmatpush.bf16.msra.mxu0 0
    %727 = vmatpush.bf16.msra.mxu0 %v715
    %728 = vmatmul.bf16.gmra.mxu0 %v718
    %v729 = vpop.f32.mrf.mxu0
    %v730 = vadd.f32 0.0, %v729
    %v731 = vpop.f32.mrf.mxu0
    %v732 = vadd.f32 0.0, %v731
    %733 = vdwg.mxu0
    %736 = vrot.lane.b32.xlu0 %v730, 24
    %v737 = vpop.permute.xlu0 %736
    %738 = vrot.lane.b32.xlu0 %v732, 24
    %v739 = vpop.permute.xlu0 %738
    %vm742 = vcmask 261312
    %743 = vst.msk [vmem:[#allocation2] sm:$0xff] %vm742, %v737
    %744 = vst.msk [vmem:[#allocation2 + $0x8] sm:$0xff] %vm742, %v739
    %745 = vrot.lane.b32.xlu0 %v433, 116
    %v746 = vpop.permute.xlu0 %745
    %748 = vmatpush.bf16.msra.mxu0 0
    %749 = vmatpush.bf16.msra.mxu0 0
    %750 = vmatpush.bf16.msra.mxu0 0
    %751 = vmatpush.bf16.msra.mxu0 0
    %752 = vmatpush.bf16.msra.mxu0 0
    %753 = vmatpush.bf16.msra.mxu0 0
    %754 = vmatpush.bf16.msra.mxu0 0
    %755 = vmatpush.bf16.msra.mxu0 %v746
    %756 = vmatmul.bf16.gmra.mxu0 %v718
    %v757 = vpop.f32.mrf.mxu0
    %v758 = vadd.f32 0.0, %v757
    %v759 = vpop.f32.mrf.mxu0
    %v760 = vadd.f32 0.0, %v759
    %761 = vdwg.mxu0
    %764 = vrot.lane.b32.xlu0 %v758, 12
    %v765 = vpop.permute.xlu0 %764
    %766 = vrot.lane.b32.xlu0 %v760, 12
    %v767 = vpop.permute.xlu0 %766
    %vm770 = vcmask 130144
    %771 = vst.msk [vmem:[#allocation3] sm:$0xff] %vm770, %v765
    %772 = vst.msk [vmem:[#allocation3 + $0x8] sm:$0xff] %vm770, %v767
    %v773 = vpack.c.bf16 %v198, %v196
    %v774 = vpack.c.bf16 %v240, %v238
    %v776 = vsel %vm368, %v773, 0
    %v779 = vsel %vm368, %v774, 0
    %781 = vmatpush.bf16.xpose.msra.mxu0 0
    %782 = vmatpush.bf16.xpose.msra.mxu0 0
    %783 = vmatpush.bf16.xpose.msra.mxu0 0
    %784 = vmatpush.bf16.xpose.msra.mxu0 0
    %785 = vmatpush.bf16.xpose.msra.mxu0 0
    %786 = vmatpush.bf16.xpose.msra.mxu0 0
    %787 = vmatpush.bf16.xpose.msra.mxu0 0
    %788 = vmatpush.bf16.xpose.msra.mxu0 %v779
    %789 = vmatmul.bf16.gmra.mxu0 %v776
    %v790 = vpop.f32.mrf.mxu0
    %v791 = vadd.f32 0.0, %v790
    %v792 = vpop.f32.mrf.mxu0
    %v793 = vadd.f32 0.0, %v792
    %794 = vdwg.mxu0
    %v795 = vsel %vm389, %v791, -inf
    %796 = vmax.xlane.f32.xlu0 %v795
    %v797 = vpop.xlane.xlu0 %796
    %v798 = vsel %vm389, %v793, -inf
    %799 = vmax.xlane.f32.xlu0 %v798
    %v800 = vpop.xlane.xlu0 %799
    %v801 = vsub.f32 %v791, %v797
    %v802 = vsub.f32 %v793, %v800
    %v803 = vmul.f32 %v801, 1.442695
    %v804 = vpow.pop %v803
    %v805 = vmul.f32 %v802, 1.442695
    %v806 = vpow.pop %v805
    %v807 = vsel %vm389, %v804, 0.0
    %808 = vadd.xlane.f32.xlu0 %v807
    %v809 = vpop.xlane.xlu0 %808
    %v810 = vsel %vm389, %v806, 0.0
    %811 = vadd.xlane.f32.xlu0 %v810
    %v812 = vpop.xlane.xlu0 %811
    %v813 = vrcp.pop %v809
    %v814 = vrcp.pop %v812
    %v815 = vmul.f32 %v804, %v813
    %v816 = vmul.f32 %v806, %v814
    %v817 = vpack.c.bf16 %v816, %v815
    %v818 = vpack.c.bf16 %v279, %v277
    %v820 = vsel %vm389, %v817, 0
    %822 = vmatpush.bf16.msra.mxu0 0
    %823 = vmatpush.bf16.msra.mxu0 0
    %824 = vmatpush.bf16.msra.mxu0 0
    %825 = vmatpush.bf16.msra.mxu0 0
    %826 = vmatpush.bf16.msra.mxu0 0
    %827 = vmatpush.bf16.msra.mxu0 0
    %828 = vmatpush.bf16.msra.mxu0 0
    %829 = vmatpush.bf16.msra.mxu0 %v818
    %830 = vmatmul.bf16.gmra.mxu0 %v820
    %v831 = vpop.f32.mrf.mxu0
    %v832 = vadd.f32 0.0, %v831
    %v833 = vpop.f32.mrf.mxu0
    %v834 = vadd.f32 0.0, %v833
    %835 = vdwg.mxu0
    %836 = vst.msk [vmem:[#allocation2 + $0x10] sm:$0xff] %vm368, %v832
    %837 = vst.msk [vmem:[#allocation2 + $0x18] sm:$0xff] %vm368, %v834
    %v838 = vpack.c.bf16 %v365, %v364
    %839 = vmatpush.bf16.msra.mxu0 0
    %840 = vmatpush.bf16.msra.mxu0 0
    %841 = vmatpush.bf16.msra.mxu0 0
    %842 = vmatpush.bf16.msra.mxu0 0
    %843 = vmatpush.bf16.msra.mxu0 0
    %844 = vmatpush.bf16.msra.mxu0 0
    %845 = vmatpush.bf16.msra.mxu0 0
    %846 = vmatpush.bf16.msra.mxu0 %v838
    %847 = vmatmul.bf16.gmra.mxu0 %v820
    %v848 = vpop.f32.mrf.mxu0
    %v849 = vadd.f32 0.0, %v848
    %v850 = vpop.f32.mrf.mxu0
    %v851 = vadd.f32 0.0, %v850
    %852 = vdwg.mxu0
    %853 = vst.msk [vmem:[#allocation3 + $0x10] sm:$0xff] %vm448, %v849
    %854 = vst.msk [vmem:[#allocation3 + $0x18] sm:$0xff] %vm448, %v851
    %856 = vrot.lane.b32.xlu0 %v773, 120
    %v857 = vpop.permute.xlu0 %856
    %859 = vrot.lane.b32.xlu0 %v774, 120
    %v860 = vpop.permute.xlu0 %859
    %v862 = vsel %vm368, %v857, 0
    %v865 = vsel %vm368, %v860, 0
    %867 = vmatpush.bf16.xpose.msra.mxu0 0
    %868 = vmatpush.bf16.xpose.msra.mxu0 0
    %869 = vmatpush.bf16.xpose.msra.mxu0 0
    %870 = vmatpush.bf16.xpose.msra.mxu0 0
    %871 = vmatpush.bf16.xpose.msra.mxu0 0
    %872 = vmatpush.bf16.xpose.msra.mxu0 0
    %873 = vmatpush.bf16.xpose.msra.mxu0 0
    %874 = vmatpush.bf16.xpose.msra.mxu0 %v865
    %875 = vmatmul.bf16.gmra.mxu0 %v862
    %v876 = vpop.f32.mrf.mxu0
    %v877 = vadd.f32 0.0, %v876
    %v878 = vpop.f32.mrf.mxu0
    %v879 = vadd.f32 0.0, %v878
    %880 = vdwg.mxu0
    %v881 = vsel %vm389, %v877, -inf
    %882 = vmax.xlane.f32.xlu0 %v881
    %v883 = vpop.xlane.xlu0 %882
    %v884 = vsel %vm389, %v879, -inf
    %885 = vmax.xlane.f32.xlu0 %v884
    %v886 = vpop.xlane.xlu0 %885
    %v887 = vsub.f32 %v877, %v883
    %v888 = vsub.f32 %v879, %v886
    %v889 = vmul.f32 %v887, 1.442695
    %v890 = vpow.pop %v889
    %v891 = vmul.f32 %v888, 1.442695
    %v892 = vpow.pop %v891
    %v893 = vsel %vm389, %v890, 0.0
    %894 = vadd.xlane.f32.xlu0 %v893
    %v895 = vpop.xlane.xlu0 %894
    %v896 = vsel %vm389, %v892, 0.0
    %897 = vadd.xlane.f32.xlu0 %v896
    %v898 = vpop.xlane.xlu0 %897
    %v899 = vrcp.pop %v895
    %v900 = vrcp.pop %v898
    %v901 = vmul.f32 %v890, %v899
    %v902 = vmul.f32 %v892, %v900
    %v903 = vpack.c.bf16 %v902, %v901
    %905 = vrot.lane.b32.xlu0 %v818, 120
    %v906 = vpop.permute.xlu0 %905
    %v909 = vsel %vm389, %v903, 0
    %911 = vmatpush.bf16.msra.mxu0 0
    %912 = vmatpush.bf16.msra.mxu0 0
    %913 = vmatpush.bf16.msra.mxu0 0
    %914 = vmatpush.bf16.msra.mxu0 0
    %915 = vmatpush.bf16.msra.mxu0 0
    %916 = vmatpush.bf16.msra.mxu0 0
    %917 = vmatpush.bf16.msra.mxu0 0
    %918 = vmatpush.bf16.msra.mxu0 %v906
    %919 = vmatmul.bf16.gmra.mxu0 %v909
    %v920 = vpop.f32.mrf.mxu0
    %v921 = vadd.f32 0.0, %v920
    %v922 = vpop.f32.mrf.mxu0
    %v923 = vadd.f32 0.0, %v922
    %924 = vdwg.mxu0
    %927 = vrot.lane.b32.xlu0 %v921, 8
    %v928 = vpop.permute.xlu0 %927
    %929 = vrot.lane.b32.xlu0 %v923, 8
    %v930 = vpop.permute.xlu0 %929
    %933 = vst.msk [vmem:[#allocation2 + $0x10] sm:$0xff] %vm529, %v928
    %934 = vst.msk [vmem:[#allocation2 + $0x18] sm:$0xff] %vm529, %v930
    %936 = vrot.lane.b32.xlu0 %v838, 124
    %v937 = vpop.permute.xlu0 %936
    %939 = vmatpush.bf16.msra.mxu0 0
    %940 = vmatpush.bf16.msra.mxu0 0
    %941 = vmatpush.bf16.msra.mxu0 0
    %942 = vmatpush.bf16.msra.mxu0 0
    %943 = vmatpush.bf16.msra.mxu0 0
    %944 = vmatpush.bf16.msra.mxu0 0
    %945 = vmatpush.bf16.msra.mxu0 0
    %946 = vmatpush.bf16.msra.mxu0 %v937
    %947 = vmatmul.bf16.gmra.mxu0 %v909
    %v948 = vpop.f32.mrf.mxu0
    %v949 = vadd.f32 0.0, %v948
    %v950 = vpop.f32.mrf.mxu0
    %v951 = vadd.f32 0.0, %v950
    %952 = vdwg.mxu0
    %955 = vrot.lane.b32.xlu0 %v949, 4
    %v956 = vpop.permute.xlu0 %955
    %957 = vrot.lane.b32.xlu0 %v951, 4
    %v958 = vpop.permute.xlu0 %957
    %961 = vst.msk [vmem:[#allocation3 + $0x10] sm:$0xff] %vm558, %v956
    %962 = vst.msk [vmem:[#allocation3 + $0x18] sm:$0xff] %vm558, %v958
    %963 = vrot.lane.b32.xlu0 %v773, 112
    %v964 = vpop.permute.xlu0 %963
    %965 = vrot.lane.b32.xlu0 %v774, 112
    %v966 = vpop.permute.xlu0 %965
    %v968 = vsel %vm368, %v964, 0
    %v971 = vsel %vm368, %v966, 0
    %973 = vmatpush.bf16.xpose.msra.mxu0 0
    %974 = vmatpush.bf16.xpose.msra.mxu0 0
    %975 = vmatpush.bf16.xpose.msra.mxu0 0
    %976 = vmatpush.bf16.xpose.msra.mxu0 0
    %977 = vmatpush.bf16.xpose.msra.mxu0 0
    %978 = vmatpush.bf16.xpose.msra.mxu0 0
    %979 = vmatpush.bf16.xpose.msra.mxu0 0
    %980 = vmatpush.bf16.xpose.msra.mxu0 %v971
    %981 = vmatmul.bf16.gmra.mxu0 %v968
    %v982 = vpop.f32.mrf.mxu0
    %v983 = vadd.f32 0.0, %v982
    %v984 = vpop.f32.mrf.mxu0
    %v985 = vadd.f32 0.0, %v984
    %986 = vdwg.mxu0
    %v987 = vsel %vm389, %v983, -inf
    %988 = vmax.xlane.f32.xlu0 %v987
    %v989 = vpop.xlane.xlu0 %988
    %v990 = vsel %vm389, %v985, -inf
    %991 = vmax.xlane.f32.xlu0 %v990
    %v992 = vpop.xlane.xlu0 %991
    %v993 = vsub.f32 %v983, %v989
    %v994 = vsub.f32 %v985, %v992
    %v995 = vmul.f32 %v993, 1.442695
    %v996 = vpow.pop %v995
    %v997 = vmul.f32 %v994, 1.442695
    %v998 = vpow.pop %v997
    %v999 = vsel %vm389, %v996, 0.0
    %1000 = vadd.xlane.f32.xlu0 %v999
    %v1001 = vpop.xlane.xlu0 %1000
    %v1002 = vsel %vm389, %v998, 0.0
    %1003 = vadd.xlane.f32.xlu0 %v1002
    %v1004 = vpop.xlane.xlu0 %1003
    %v1005 = vrcp.pop %v1001
    %v1006 = vrcp.pop %v1004
    %v1007 = vmul.f32 %v996, %v1005
    %v1008 = vmul.f32 %v998, %v1006
    %v1009 = vpack.c.bf16 %v1008, %v1007
    %1010 = vrot.lane.b32.xlu0 %v818, 112
    %v1011 = vpop.permute.xlu0 %1010
    %v1014 = vsel %vm389, %v1009, 0
    %1016 = vmatpush.bf16.msra.mxu0 0
    %1017 = vmatpush.bf16.msra.mxu0 0
    %1018 = vmatpush.bf16.msra.mxu0 0
    %1019 = vmatpush.bf16.msra.mxu0 0
    %1020 = vmatpush.bf16.msra.mxu0 0
    %1021 = vmatpush.bf16.msra.mxu0 0
    %1022 = vmatpush.bf16.msra.mxu0 0
    %1023 = vmatpush.bf16.msra.mxu0 %v1011
    %1024 = vmatmul.bf16.gmra.mxu0 %v1014
    %v1025 = vpop.f32.mrf.mxu0
    %v1026 = vadd.f32 0.0, %v1025
    %v1027 = vpop.f32.mrf.mxu0
    %v1028 = vadd.f32 0.0, %v1027
    %1029 = vdwg.mxu0
    %1032 = vrot.lane.b32.xlu0 %v1026, 16
    %v1033 = vpop.permute.xlu0 %1032
    %1034 = vrot.lane.b32.xlu0 %v1028, 16
    %v1035 = vpop.permute.xlu0 %1034
    %1038 = vst.msk [vmem:[#allocation2 + $0x10] sm:$0xff] %vm636, %v1033
    %1039 = vst.msk [vmem:[#allocation2 + $0x18] sm:$0xff] %vm636, %v1035
    %1040 = vrot.lane.b32.xlu0 %v838, 120
    %v1041 = vpop.permute.xlu0 %1040
    %1043 = vmatpush.bf16.msra.mxu0 0
    %1044 = vmatpush.bf16.msra.mxu0 0
    %1045 = vmatpush.bf16.msra.mxu0 0
    %1046 = vmatpush.bf16.msra.mxu0 0
    %1047 = vmatpush.bf16.msra.mxu0 0
    %1048 = vmatpush.bf16.msra.mxu0 0
    %1049 = vmatpush.bf16.msra.mxu0 0
    %1050 = vmatpush.bf16.msra.mxu0 %v1041
    %1051 = vmatmul.bf16.gmra.mxu0 %v1014
    %v1052 = vpop.f32.mrf.mxu0
    %v1053 = vadd.f32 0.0, %v1052
    %v1054 = vpop.f32.mrf.mxu0
    %v1055 = vadd.f32 0.0, %v1054
    %1056 = vdwg.mxu0
    %1059 = vrot.lane.b32.xlu0 %v1053, 8
    %v1060 = vpop.permute.xlu0 %1059
    %1061 = vrot.lane.b32.xlu0 %v1055, 8
    %v1062 = vpop.permute.xlu0 %1061
    %1065 = vst.msk [vmem:[#allocation3 + $0x10] sm:$0xff] %vm664, %v1060
    %1066 = vst.msk [vmem:[#allocation3 + $0x18] sm:$0xff] %vm664, %v1062
    %1067 = vrot.lane.b32.xlu0 %v773, 104
    %v1068 = vpop.permute.xlu0 %1067
    %1069 = vrot.lane.b32.xlu0 %v774, 104
    %v1070 = vpop.permute.xlu0 %1069
    %v1072 = vsel %vm368, %v1068, 0
    %v1075 = vsel %vm368, %v1070, 0
    %1077 = vmatpush.bf16.xpose.msra.mxu0 0
    %1078 = vmatpush.bf16.xpose.msra.mxu0 0
    %1079 = vmatpush.bf16.xpose.msra.mxu0 0
    %1080 = vmatpush.bf16.xpose.msra.mxu0 0
    %1081 = vmatpush.bf16.xpose.msra.mxu0 0
    %1082 = vmatpush.bf16.xpose.msra.mxu0 0
    %1083 = vmatpush.bf16.xpose.msra.mxu0 0
    %1084 = vmatpush.bf16.xpose.msra.mxu0 %v1075
    %1085 = vmatmul.bf16.gmra.mxu0 %v1072
    %v1086 = vpop.f32.mrf.mxu0
    %v1087 = vadd.f32 0.0, %v1086
    %v1088 = vpop.f32.mrf.mxu0
    %v1089 = vadd.f32 0.0, %v1088
    %1090 = vdwg.mxu0
    %v1091 = vsel %vm389, %v1087, -inf
    %1092 = vmax.xlane.f32.xlu0 %v1091
    %v1093 = vpop.xlane.xlu0 %1092
    %v1094 = vsel %vm389, %v1089, -inf
    %1095 = vmax.xlane.f32.xlu0 %v1094
    %v1096 = vpop.xlane.xlu0 %1095
    %v1097 = vsub.f32 %v1087, %v1093
    %v1098 = vsub.f32 %v1089, %v1096
    %v1099 = vmul.f32 %v1097, 1.442695
    %v1100 = vpow.pop %v1099
    %v1101 = vmul.f32 %v1098, 1.442695
    %v1102 = vpow.pop %v1101
    %v1103 = vsel %vm389, %v1100, 0.0
    %1104 = vadd.xlane.f32.xlu0 %v1103
    %v1105 = vpop.xlane.xlu0 %1104
    %v1106 = vsel %vm389, %v1102, 0.0
    %1107 = vadd.xlane.f32.xlu0 %v1106
    %v1108 = vpop.xlane.xlu0 %1107
    %v1109 = vrcp.pop %v1105
    %v1110 = vrcp.pop %v1108
    %v1111 = vmul.f32 %v1100, %v1109
    %v1112 = vmul.f32 %v1102, %v1110
    %v1113 = vpack.c.bf16 %v1112, %v1111
    %1114 = vrot.lane.b32.xlu0 %v818, 104
    %v1115 = vpop.permute.xlu0 %1114
    %v1118 = vsel %vm389, %v1113, 0
    %1120 = vmatpush.bf16.msra.mxu0 0
    %1121 = vmatpush.bf16.msra.mxu0 0
    %1122 = vmatpush.bf16.msra.mxu0 0
    %1123 = vmatpush.bf16.msra.mxu0 0
    %1124 = vmatpush.bf16.msra.mxu0 0
    %1125 = vmatpush.bf16.msra.mxu0 0
    %1126 = vmatpush.bf16.msra.mxu0 0
    %1127 = vmatpush.bf16.msra.mxu0 %v1115
    %1128 = vmatmul.bf16.gmra.mxu0 %v1118
    %v1129 = vpop.f32.mrf.mxu0
    %v1130 = vadd.f32 0.0, %v1129
    %v1131 = vpop.f32.mrf.mxu0
    %v1132 = vadd.f32 0.0, %v1131
    %1133 = vdwg.mxu0
    %1136 = vrot.lane.b32.xlu0 %v1130, 24
    %v1137 = vpop.permute.xlu0 %1136
    %1138 = vrot.lane.b32.xlu0 %v1132, 24
    %v1139 = vpop.permute.xlu0 %1138
    %1142 = vst.msk [vmem:[#allocation2 + $0x10] sm:$0xff] %vm742, %v1137
    %1143 = vst.msk [vmem:[#allocation2 + $0x18] sm:$0xff] %vm742, %v1139
    %1144 = vrot.lane.b32.xlu0 %v838, 116
    %v1145 = vpop.permute.xlu0 %1144
    %1147 = vmatpush.bf16.msra.mxu0 0
    %1148 = vmatpush.bf16.msra.mxu0 0
    %1149 = vmatpush.bf16.msra.mxu0 0
    %1150 = vmatpush.bf16.msra.mxu0 0
    %1151 = vmatpush.bf16.msra.mxu0 0
    %1152 = vmatpush.bf16.msra.mxu0 0
    %1153 = vmatpush.bf16.msra.mxu0 0
    %1154 = vmatpush.bf16.msra.mxu0 %v1145
    %1155 = vmatmul.bf16.gmra.mxu0 %v1118
    %v1156 = vpop.f32.mrf.mxu0
    %v1157 = vadd.f32 0.0, %v1156
    %v1158 = vpop.f32.mrf.mxu0
    %v1159 = vadd.f32 0.0, %v1158
    %1160 = vdwg.mxu0
    %1163 = vrot.lane.b32.xlu0 %v1157, 12
    %v1164 = vpop.permute.xlu0 %1163
    %1165 = vrot.lane.b32.xlu0 %v1159, 12
    %v1166 = vpop.permute.xlu0 %1165
    %1169 = vst.msk [vmem:[#allocation3 + $0x10] sm:$0xff] %vm770, %v1164
    %1170 = vst.msk [vmem:[#allocation3 + $0x18] sm:$0xff] %vm770, %v1166
    %v1171 = vld [vmem:[#allocation2] sm:$0xff]
    %v1172 = vld [vmem:[#allocation2 + $0x8] sm:$0xff]
    %v1173 = vld [vmem:[#allocation2 + $0x10] sm:$0xff]
    %v1174 = vld [vmem:[#allocation2 + $0x18] sm:$0xff]
    %v1175 = vpack.c.bf16 %v1172, %v1171
    %v1176 = vpack.c.bf16 %v1174, %v1173
    %v1177 = vld [vmem:[%s10] sm:$0xf]
    %v1178 = vld [vmem:[%s10 + $0x4] sm:$0xf]
    %v1179 = vld [vmem:[%s10 + $0x8] sm:$0xf]
    %v1180 = vld [vmem:[%s10 + $0xc] sm:$0xf]
    %v1181 = vld [vmem:[%s11] sm:$0x1]
    %v1183 = vperm.slane %v1181, 0
    %v1189 = vunpack.c.l.b16 %v1177
    %v1190 = vunpack.c.l.b16 %v1178
    %v1191 = vunpack.c.l.b16 %v1179
    %v1192 = vunpack.c.l.b16 %v1180
    %v1193 = vpack.c.b16 %v1190, %v1189
    %v1194 = vpack.c.b16 %v1192, %v1191
    %v1198 = vsel %vm174, %v1175, 0
    %v1201 = vsel %vm174, %v1176, 0
    %1203 = vmatpush.bf16.msra.mxu0 0
    %1204 = vmatpush.bf16.msra.mxu0 0
    %1205 = vmatpush.bf16.msra.mxu0 0
    %1206 = vmatpush.bf16.msra.mxu0 0
    %1207 = vmatpush.bf16.msra.mxu0 0
    %1208 = vmatpush.bf16.msra.mxu0 0
    %1209 = vmatpush.bf16.msra.mxu0 %v1194
    %1210 = vmatpush.bf16.msra.mxu0 %v1193
    %1211 = vmatmul.bf16.gmra.mxu0 %v1198
    %v1212 = vpop.f32.mrf.mxu0
    %v1213 = vadd.f32 %v1183, %v1212
    %v1214 = vpop.f32.mrf.mxu0
    %v1215 = vadd.f32 %v1183, %v1214
    %1216 = vmatmul.bf16.gmra.mxu0 %v1201
    %v1217 = vpop.f32.mrf.mxu0
    %v1218 = vadd.f32 %v1183, %v1217
    %v1219 = vpop.f32.mrf.mxu0
    %v1220 = vadd.f32 %v1183, %v1219
    %1221 = vdwg.mxu0
    %v1222 = vld [vmem:[#allocation3] sm:$0xff]
    %v1223 = vld [vmem:[#allocation3 + $0x8] sm:$0xff]
    %v1224 = vld [vmem:[#allocation3 + $0x10] sm:$0xff]
    %v1225 = vld [vmem:[#allocation3 + $0x18] sm:$0xff]
    %v1226 = vsub.f32 %v1222, %v362
    %v1227 = vsub.f32 %v1223, %v363
    %v1228 = vsub.f32 %v1224, %v364
    %v1229 = vsub.f32 %v1225, %v365
    %v1230 = vpack.c.bf16 %v1227, %v1226
    %v1231 = vpack.c.bf16 %v1229, %v1228
    %v1232 = vld [vmem:[%s12] sm:$0xf]
    %v1233 = vld [vmem:[%s12 + $0x4] sm:$0xf]
    %v1234 = vld [vmem:[%s13] sm:$0x1]
    %v1236 = vperm.slane %v1234, 0
    %v1240 = vunpack.c.l.b16 %v1232
    %v1241 = vunpack.c.l.b16 %v1233
    %v1242 = vpack.c.b16 %v1241, %v1240
    %v1245 = vsel %vm389, %v1230, 0
    %v1248 = vsel %vm389, %v1231, 0
    %1250 = vmatpush.bf16.msra.mxu0 0
    %1251 = vmatpush.bf16.msra.mxu0 0
    %1252 = vmatpush.bf16.msra.mxu0 0
    %1253 = vmatpush.bf16.msra.mxu0 0
    %1254 = vmatpush.bf16.msra.mxu0 0
    %1255 = vmatpush.bf16.msra.mxu0 0
    %1256 = vmatpush.bf16.msra.mxu0 0
    %1257 = vmatpush.bf16.msra.mxu0 %v1242
    %1258 = vmatmul.bf16.gmra.mxu0 %v1245
    %v1259 = vpop.f32.mrf.mxu0
    %v1260 = vadd.f32 %v1236, %v1259
    %v1261 = vpop.f32.mrf.mxu0
    %v1262 = vadd.f32 %v1236, %v1261
    %1263 = vmatmul.bf16.gmra.mxu0 %v1248
    %v1264 = vpop.f32.mrf.mxu0
    %v1265 = vadd.f32 %v1236, %v1264
    %v1266 = vpop.f32.mrf.mxu0
    %v1267 = vadd.f32 %v1236, %v1266
    %1268 = vdwg.mxu0
    %v1269 = vadd.f32 %v152, %v1213
    %v1270 = vadd.f32 %v153, %v1215
    %v1271 = vadd.f32 %v154, %v1218
    %v1272 = vadd.f32 %v155, %v1220
    %v1273 = vpack.c.bf16 %v1270, %v1269
    %v1274 = vpack.c.bf16 %v1272, %v1271
    %v1275 = vld [vmem:[%s14] sm:$0xf]
    %v1276 = vld [vmem:[%s14 + $0x4] sm:$0xf]
    %v1277 = vld [vmem:[%s14 + $0x8] sm:$0xf]
    %v1278 = vld [vmem:[%s14 + $0xc] sm:$0xf]
    %v1279 = vld [vmem:[%s15] sm:$0x1]
    %v1281 = vperm.slane %v1279, 0
    %v1287 = vunpack.c.l.b16 %v1275
    %v1288 = vunpack.c.l.b16 %v1276
    %v1289 = vunpack.c.l.b16 %v1277
    %v1290 = vunpack.c.l.b16 %v1278
    %v1291 = vpack.c.b16 %v1288, %v1287
    %v1292 = vpack.c.b16 %v1290, %v1289
    %v1296 = vsel %vm174, %v1273, 0
    %v1299 = vsel %vm174, %v1274, 0
    %1301 = vmatpush.bf16.msra.mxu0 0
    %1302 = vmatpush.bf16.msra.mxu0 0
    %1303 = vmatpush.bf16.msra.mxu0 0
    %1304 = vmatpush.bf16.msra.mxu0 0
    %1305 = vmatpush.bf16.msra.mxu0 0
    %1306 = vmatpush.bf16.msra.mxu0 0
    %1307 = vmatpush.bf16.msra.mxu0 %v1292
    %1308 = vmatpush.bf16.msra.mxu0 %v1291
    %1309 = vmatmul.bf16.gmra.mxu0 %v1296
    %v1310 = vpop.f32.mrf.mxu0
    %v1311 = vadd.f32 %v1281, %v1310
    %v1312 = vpop.f32.mrf.mxu0
    %v1313 = vadd.f32 %v1281, %v1312
    %1314 = vmatmul.bf16.gmra.mxu0 %v1299
    %v1315 = vpop.f32.mrf.mxu0
    %v1316 = vadd.f32 %v1281, %v1315
    %v1317 = vpop.f32.mrf.mxu0
    %v1318 = vadd.f32 %v1281, %v1317
    %1319 = vdwg.mxu0
    %s1320 = sld [smem:[#allocation4]]
    %vm1321 = vcmp.ge.f32.partialorder %v1311, 0.0
    %vm1322 = vcmp.ge.f32.partialorder %v1313, 0.0
    %vm1323 = vcmp.ge.f32.partialorder %v1316, 0.0
    %vm1324 = vcmp.ge.f32.partialorder %v1318, 0.0
    %v1325 = vstv %s1320
    %v1326 = vmul.f32 %v1325, %v1311
    %v1327 = vmul.f32 %v1325, %v1313
    %v1328 = vmul.f32 %v1325, %v1316
    %v1329 = vmul.f32 %v1325, %v1318
    %v1330 = vsel %vm1321, %v1311, %v1326
    %v1331 = vsel %vm1322, %v1313, %v1327
    %v1332 = vsel %vm1323, %v1316, %v1328
    %v1333 = vsel %vm1324, %v1318, %v1329
    %v1334 = vpack.c.bf16 %v1331, %v1330
    %v1335 = vpack.c.bf16 %v1333, %v1332
    %v1336 = vld [vmem:[%s17] sm:$0xf]
    %v1337 = vld [vmem:[%s17 + $0x4] sm:$0xf]
    %v1338 = vld [vmem:[%s17 + $0x8] sm:$0xf]
    %v1339 = vld [vmem:[%s17 + $0xc] sm:$0xf]
    %v1340 = vld [vmem:[%s17 + $0x10] sm:$0xf]
    %v1341 = vld [vmem:[%s17 + $0x14] sm:$0xf]
    %v1342 = vld [vmem:[%s17 + $0x18] sm:$0xf]
    %v1343 = vld [vmem:[%s17 + $0x1c] sm:$0xf]
    %v1344 = vld [vmem:[%s17 + $0x20] sm:$0xf]
    %v1345 = vld [vmem:[%s17 + $0x24] sm:$0xf]
    %v1346 = vld [vmem:[%s17 + $0x28] sm:$0xf]
    %v1347 = vld [vmem:[%s17 + $0x2c] sm:$0xf]
    %v1348 = vld [vmem:[%s17 + $0x30] sm:$0xf]
    %v1349 = vld [vmem:[%s17 + $0x34] sm:$0xf]
    %v1350 = vld [vmem:[%s17 + $0x38] sm:$0xf]
    %v1351 = vld [vmem:[%s17 + $0x3c] sm:$0xf]
    %v1352 = vld [vmem:[%s18] sm:$0x1]
    %v1354 = vperm.slane %v1352, 0
    %v1372 = vunpack.c.l.b16 %v1336
    %v1373 = vunpack.c.l.b16 %v1337
    %v1374 = vunpack.c.l.b16 %v1338
    %v1375 = vunpack.c.l.b16 %v1339
    %v1376 = vunpack.c.l.b16 %v1340
    %v1377 = vunpack.c.l.b16 %v1341
    %v1378 = vunpack.c.l.b16 %v1342
    %v1379 = vunpack.c.l.b16 %v1343
    %v1380 = vunpack.c.l.b16 %v1344
    %v1381 = vunpack.c.l.b16 %v1345
    %v1382 = vunpack.c.l.b16 %v1346
    %v1383 = vunpack.c.l.b16 %v1347
    %v1384 = vunpack.c.l.b16 %v1348
    %v1385 = vunpack.c.l.b16 %v1349
    %v1386 = vunpack.c.l.b16 %v1350
    %v1387 = vunpack.c.l.b16 %v1351
    %v1388 = vpack.c.b16 %v1373, %v1372
    %v1389 = vpack.c.b16 %v1375, %v1374
    %v1390 = vpack.c.b16 %v1377, %v1376
    %v1391 = vpack.c.b16 %v1379, %v1378
    %v1392 = vpack.c.b16 %v1381, %v1380
    %v1393 = vpack.c.b16 %v1383, %v1382
    %v1394 = vpack.c.b16 %v1385, %v1384
    %v1395 = vpack.c.b16 %v1387, %v1386
    %1404 = vmatpush.bf16.msra.mxu0 %v1395
    %1405 = vmatpush.bf16.msra.mxu0 %v1394
    %1406 = vmatpush.bf16.msra.mxu0 %v1393
    %1407 = vmatpush.bf16.msra.mxu0 %v1392
    %1408 = vmatpush.bf16.msra.mxu0 %v1391
    %1409 = vmatpush.bf16.msra.mxu0 %v1390
    %1410 = vmatpush.bf16.msra.mxu0 %v1389
    %1411 = vmatpush.bf16.msra.mxu0 %v1388
    %1412 = vmatmul.bf16.gmra.mxu0 %v1334
    %v1413 = vpop.f32.mrf.mxu0
    %v1414 = vadd.f32 %v1354, %v1413
    %v1415 = vpop.f32.mrf.mxu0
    %v1416 = vadd.f32 %v1354, %v1415
    %1417 = vmatmul.bf16.gmra.mxu0 %v1335
    %v1418 = vpop.f32.mrf.mxu0
    %v1419 = vadd.f32 %v1354, %v1418
    %v1420 = vpop.f32.mrf.mxu0
    %v1421 = vadd.f32 %v1354, %v1420
    %1422 = vdwg.mxu0
    %1423 = vxpose.xlu0.b32.start [1/16] %v1414, 128
    %1424 = vxpose.xlu0.b32.cont [2/16] %v1416, 128
    %1425 = vxpose.xlu0.b32.cont [3/16] 0.0, 128
    %1426 = vxpose.xlu0.b32.cont [4/16] 0.0, 128
    %1427 = vxpose.xlu0.b32.cont [5/16] 0.0, 128
    %1428 = vxpose.xlu0.b32.cont [6/16] 0.0, 128
    %1429 = vxpose.xlu0.b32.cont [7/16] 0.0, 128
    %1430 = vxpose.xlu0.b32.cont [8/16] 0.0, 128
    %1431 = vxpose.xlu0.b32.cont [9/16] 0.0, 128
    %1432 = vxpose.xlu0.b32.cont [10/16] 0.0, 128
    %1433 = vxpose.xlu0.b32.cont [11/16] 0.0, 128
    %1434 = vxpose.xlu0.b32.cont [12/16] 0.0, 128
    %1435 = vxpose.xlu0.b32.cont [13/16] 0.0, 128
    %1436 = vxpose.xlu0.b32.cont [14/16] 0.0, 128
    %1437 = vxpose.xlu0.b32.cont [15/16] 0.0, 128
    %1438 = vxpose.xlu0.b32.end [16/16] 0.0, 128
    %v1439 = vpop.trf.xlu0
    %v1440 = vpop.trf.xlu0
    %v1441 = vpop.trf.xlu0
    %v1442 = vpop.trf.xlu0
    %v1443 = vpop.trf.xlu0
    %v1444 = vpop.trf.xlu0
    %v1445 = vpop.trf.xlu0
    %v1446 = vpop.trf.xlu0
    %v1447 = vpop.trf.xlu0
    %v1448 = vpop.trf.xlu0
    %v1449 = vpop.trf.xlu0
    %v1450 = vpop.trf.xlu0
    %v1451 = vpop.trf.xlu0
    %v1452 = vpop.trf.xlu0
    %v1453 = vpop.trf.xlu0
    %v1454 = vpop.trf.xlu0
    %v1455 = vld [vmem:[%s0] sm:$0xff]
    %v1456 = vld [vmem:[%s0 + $0x8] sm:$0xff]
    %v1457 = vld [vmem:[%s0 + $0x10] sm:$0xff]
    %v1458 = vld [vmem:[%s0 + $0x18] sm:$0xff]
    %v1459 = vadd.f32 %v1455, %v1439
    %v1460 = vadd.f32 %v1456, %v1440
    %v1461 = vadd.f32 %v1457, %v1441
    %v1462 = vadd.f32 %v1458, %v1442
    %1463 = vst.msk [vmem:[%s19] sm:$0xff] %vm389, %v1459
    %1464 = vst.msk [vmem:[%s19 + $0x8] sm:$0xff] %vm389, %v1460
    %1465 = vst.msk [vmem:[%s19 + $0x10] sm:$0xff] %vm389, %v1461
    %1466 = vst.msk [vmem:[%s19 + $0x18] sm:$0xff] %vm389, %v1462
    %1467 = vxpose.xlu0.b32.start [1/16] %v1419, 128
    %1468 = vxpose.xlu0.b32.cont [2/16] %v1421, 128
    %1469 = vxpose.xlu0.b32.cont [3/16] 0.0, 128
    %1470 = vxpose.xlu0.b32.cont [4/16] 0.0, 128
    %1471 = vxpose.xlu0.b32.cont [5/16] 0.0, 128
    %1472 = vxpose.xlu0.b32.cont [6/16] 0.0, 128
    %1473 = vxpose.xlu0.b32.cont [7/16] 0.0, 128
    %1474 = vxpose.xlu0.b32.cont [8/16] 0.0, 128
    %1475 = vxpose.xlu0.b32.cont [9/16] 0.0, 128
    %1476 = vxpose.xlu0.b32.cont [10/16] 0.0, 128
    %1477 = vxpose.xlu0.b32.cont [11/16] 0.0, 128
    %1478 = vxpose.xlu0.b32.cont [12/16] 0.0, 128
    %1479 = vxpose.xlu0.b32.cont [13/16] 0.0, 128
    %1480 = vxpose.xlu0.b32.cont [14/16] 0.0, 128
    %1481 = vxpose.xlu0.b32.cont [15/16] 0.0, 128
    %1482 = vxpose.xlu0.b32.end [16/16] 0.0, 128
    %v1483 = vpop.trf.xlu0
    %v1484 = vpop.trf.xlu0
    %v1485 = vpop.trf.xlu0
    %v1486 = vpop.trf.xlu0
    %v1487 = vpop.trf.xlu0
    %v1488 = vpop.trf.xlu0
    %v1489 = vpop.trf.xlu0
    %v1490 = vpop.trf.xlu0
    %v1491 = vpop.trf.xlu0
    %v1492 = vpop.trf.xlu0
    %v1493 = vpop.trf.xlu0
    %v1494 = vpop.trf.xlu0
    %v1495 = vpop.trf.xlu0
    %v1496 = vpop.trf.xlu0
    %v1497 = vpop.trf.xlu0
    %v1498 = vpop.trf.xlu0
    %v1499 = vld [vmem:[%s103] sm:$0xff]
    %v1500 = vld [vmem:[%s103 + $0x8] sm:$0xff]
    %v1501 = vld [vmem:[%s103 + $0x10] sm:$0xff]
    %v1502 = vld [vmem:[%s103 + $0x18] sm:$0xff]
    %v1503 = vadd.f32 %v1499, %v1483
    %v1504 = vadd.f32 %v1500, %v1484
    %v1505 = vadd.f32 %v1501, %v1485
    %v1506 = vadd.f32 %v1502, %v1486
    %s1507 = scalar_lea.vmem %s19, 32
    %1508 = vst.msk [vmem:[%s1507] sm:$0xff] %vm389, %v1503
    %1509 = vst.msk [vmem:[%s1507 + $0x8] sm:$0xff] %vm389, %v1504
    %1510 = vst.msk [vmem:[%s1507 + $0x10] sm:$0xff] %vm389, %v1505
    %1511 = vst.msk [vmem:[%s1507 + $0x18] sm:$0xff] %vm389, %v1506
    %1512 = vst.msk [vmem:[#allocation5] sm:$0xff] %vm389, %v1260
    %1513 = vst.msk [vmem:[#allocation5 + $0x8] sm:$0xff] %vm389, %v1262
    %1514 = vst.msk [vmem:[#allocation5 + $0x10] sm:$0xff] %vm389, %v1265
    %1515 = vst.msk [vmem:[#allocation5 + $0x18] sm:$0xff] %vm389, %v1267
    // Predicated region
    $region78: #{tpu_custom_call.1} parent=1 // pred_check
      _
    $region79: #{tpu_custom_call.1} parent=1 // pred_check_branch
      %1517 = sbr.rel (0) target = $region81
    $region80: #{tpu_custom_call.1} parent=1 // pred_region
      _
    $region81: #{tpu_custom_call.1} parent=1 // pred_fallthru
      _
    // Predicated region
    $region82: #{tpu_custom_call.1} parent=1 // pred_check
      _
    $region83: #{tpu_custom_call.1} parent=1 // pred_check_branch
      %1519 = sbr.rel (0) target = $region85
    $region84: #{tpu_custom_call.1} parent=1 // pred_region
      %1521 = vsyncadd [#allocation6], 0
      %s1522 = sshll.u32 [#allocation5], 4
      %s1523 = int_to_ptr.vmem [resolvable:$true] %s1522
      %s1524 = sshll.u32 %s20, 4
      %s1525 = int_to_ptr.hbm [resolvable:$true] %s1524
      %1530 = dma.vmem_to_hbm [thread:$0]  %s1523, 512, %s1525, [#allocation6], 128, 128, 8
    $region85: #{tpu_custom_call.1} parent=1 // pred_fallthru
      _
    // Predicated region
    $region86: #{tpu_custom_call.1} parent=1 // pred_check
      _
    $region87: #{tpu_custom_call.1} parent=1 // pred_check_branch
      %1532 = sbr.rel (0) target = $region89
    $region88: #{tpu_custom_call.1} parent=1 // pred_region
      _
    $region89: #{tpu_custom_call.1} parent=1 // pred_fallthru
      _
    // Predicated region
    $region90: #{tpu_custom_call.1} parent=1 // pred_check
      _
    $region91: #{tpu_custom_call.1} parent=1 // pred_check_branch
      %1534 = sbr.rel (0) target = $region93
    $region92: #{tpu_custom_call.1} parent=1 // pred_region
      %1536 = dma.done [#allocation6], 512
    $region93: #{tpu_custom_call.1} parent=1 // pred_fallthru
      _
    %1537 = vsyncpa [#allocation6], 1

</llo_original>
